<compile_context>
chip_gen: v7x
topology: tpu7x:2x2x1
jax: 0.10.0
libtpu: 0.0.40
codegen_flags: <defaults>
</compile_context>

<pallas_src>
import functools
import math

import jax
import jax.numpy as jnp
from jax.experimental import pallas as pl
from jax.experimental.pallas import tpu as pltpu


# ----------------------------------------------------------------------------- helpers
def _layernorm(x, gamma, beta, eps=1e-5):
    mu = jnp.mean(x, axis=-1, keepdims=True)
    var = jnp.mean(jnp.square(x - mu), axis=-1, keepdims=True)
    return (x - mu) * jax.lax.rsqrt(var + eps) * gamma + beta


def _fast_recip(x):
    # EUP approximate reciprocal (otherwise-idle vrcp slot) + one Newton refinement
    # step, so softmax normalisation stays ~f32 accurate without the exact divide.
    r = pl.reciprocal(x, approx=True)
    return r * (2.0 - x * r)


def _softmax_lastdim(x):
    x = x - jnp.max(x, axis=-1, keepdims=True)
    e = jnp.exp(x)
    return e * _fast_recip(jnp.sum(e, axis=-1, keepdims=True))


def _pos_encoding(seq_len, d_model):
    pos = jnp.arange(seq_len, dtype=jnp.float32)[:, None]
    div = jnp.exp(jnp.arange(0, d_model, 2, dtype=jnp.float32)
                  * (-math.log(10000.0) / d_model))
    pe = jnp.zeros((seq_len, d_model), jnp.float32)
    pe = pe.at[:, 0::2].set(jnp.sin(pos * div))
    pe = pe.at[:, 1::2].set(jnp.cos(pos * div))
    return pe


# ----------------------------------------------------------------------------- kernel
def _master_kernel(
    src_ref,            # (T, d_feat)        per-batch features
    gx_ref,             # (1, d_gate)        gate input (last timestep)
    wg_t_ref, bg_ref,   # (d_gate, d_feat), (1, d_feat)
    win_t_ref, bin_ref, # (d_feat, D), (1, D)
    pe_ref,             # (T, D)
    wqkv_ref,           # (3D, D)            native (out, in) layout, [Wq; Wk; Wv]
    g1_ref, b1_ref, g2_ref, b2_ref,          # LayerNorm affine, (1, D) each
    w1_t_ref, bb1_ref, w2_t_ref, bb2_ref,    # FFN: (D, D), (1, D), (D, D), (1, D)
    wt_t_ref,           # (D, D)             TemporalAttention trans (pre-transposed)
    wout_ref, bout_ref, # (1, D), (1, 1)     final Linear(d_model, 1)
    o_ref,              # (1, 1)             per-batch prediction
    *, nhead: int, d_model: int, d_feat: int, beta: float,
):
    f32 = jnp.float32
    T = src_ref.shape[0]
    D = d_model
    H = nhead
    dh = D // H

    # ---- Gate: d_feat * softmax(Linear(gate_input) / beta) -----------------------
    g_lin = jnp.dot(gx_ref[...], wg_t_ref[...], preferred_element_type=f32) + bg_ref[...]
    gate = float(d_feat) * _softmax_lastdim(g_lin * (1.0 / beta))          # (1, d_feat)

    # ---- feature gating -> Linear(d_feat, d_model) -> positional encoding --------
    z = jnp.dot(src_ref[...] * gate, win_t_ref[...], preferred_element_type=f32)
    z = z + bin_ref[...] + pe_ref[...]                                     # (T, D)

    # ---- TAttention ----------------------------------------------------------------
    xn = _layernorm(z, g1_ref[...], b1_ref[...])                           # norm1

    # Fused QKV computed in transposed orientation:
    #   qkv_t = [Wq; Wk; Wv] @ xn^T : (3D, D) @ (D, T) -> (3D, T)
    # so the per-head split below is a sublane-aligned slice + a free reshape
    # (no lane-splitting relayout, no per-head loop, no concat).
    qkv_t = jnp.dot(wqkv_ref[...], xn.T, preferred_element_type=f32)       # (3D, T)

    def _heads(m_t):                                   # (D, T) -> (H, T, dh)
        return jnp.swapaxes(m_t.reshape(H, dh, T), 1, 2)

    q_h = _heads(qkv_t[0 * D:1 * D])
    k_h = _heads(qkv_t[1 * D:2 * D])
    v_h = _heads(qkv_t[2 * D:3 * D])

    # One head-batched MXU matmul for scores and one for the value mix.
    # NOTE: no 1/sqrt(dh) scaling - this matches the reference TAttention exactly.
    s = jnp.einsum("htd,hsd->hts", q_h, k_h, preferred_element_type=f32)   # (H, T, T)
    p = _softmax_lastdim(s)
    att_h = jnp.einsum("hts,hsd->htd", p, v_h, preferred_element_type=f32) # (H, T, dh)
    att = jnp.swapaxes(att_h, 1, 2).reshape(D, T).T                        # (T, D)

    # Residual is applied to the *normed* activations, as in the reference module.
    xt = xn + att
    xt2 = _layernorm(xt, g2_ref[...], b2_ref[...])                         # norm2
    h1 = jnp.dot(xt2, w1_t_ref[...], preferred_element_type=f32) + bb1_ref[...]
    h1 = jnp.maximum(h1, 0.0)
    ffn = jnp.dot(h1, w2_t_ref[...], preferred_element_type=f32) + bb2_ref[...]
    y = xt2 + ffn                                                          # (T, D)

    # ---- TemporalAttention: softmax over T, weighted temporal pooling ------------
    ht = jnp.dot(y, wt_t_ref[...], preferred_element_type=f32)             # (T, D)
    lam = jnp.sum(ht * ht[T - 1:T, :], axis=-1, keepdims=True)             # (T, 1)
    lam = jnp.exp(lam - jnp.max(lam, axis=0, keepdims=True))
    lam = lam * _fast_recip(jnp.sum(lam, axis=0, keepdims=True))
    pooled = jnp.sum(lam * y, axis=0, keepdims=True)                       # (1, D)

    # ---- final Linear(d_model, 1) --------------------------------------------------
    pred = jnp.sum(pooled * wout_ref[...], axis=-1, keepdims=True) + bout_ref[...]
    o_ref[...] = pred.astype(o_ref.dtype)


# ----------------------------------------------------------------------------- wrapper
def master_forward(x, params, *, d_feat, d_model, t_nhead, gate_start, gate_end, beta):
    """x: (N, T, F_total) float32. Returns (N,) predictions (eval-mode MASTER forward)."""
    assert d_model % t_nhead == 0, "kernel assumes d_model divisible by t_nhead"
    N, T, _ = x.shape
    d_gate = gate_end - gate_start

    src = x[:, :, :gate_start]                           # (N, T, d_feat)
    gate_x = x[:, -1, gate_start:gate_end][:, None, :]   # (N, 1, d_gate)
    pe = _pos_encoding(T, d_model)

    row = lambda v: v.reshape(1, -1)
    wqkv = jnp.concatenate([params["wq"], params["wk"], params["wv"]], axis=0)  # (3D, D)
    weights = (
        params["wg"].T, row(params["bg"]),
        params["win"].T, row(params["bin"]),
        pe,
        wqkv,
        row(params["ln1_g"]), row(params["ln1_b"]),
        row(params["ln2_g"]), row(params["ln2_b"]),
        params["w1"].T, row(params["b1"]),
        params["w2"].T, row(params["b2"]),
        params["wt"].T,
        params["wout"],                  # (1, D) already (nn.Linear(d_model, 1).weight)
        params["bout"].reshape(1, 1),
    )

    kernel = functools.partial(
        _master_kernel, nhead=t_nhead, d_model=d_model, d_feat=d_feat, beta=float(beta))

    def _const(a):
        return pl.BlockSpec(a.shape, lambda b: (0,) * a.ndim)

    in_specs = [
        pl.BlockSpec((pl.Squeezed(), T, d_feat), lambda b: (b, 0, 0)),   # src
        pl.BlockSpec((pl.Squeezed(), 1, d_gate), lambda b: (b, 0, 0)),   # gate input
    ] + [_const(w) for w in weights]

    # Advisory cost estimate for XLA scheduling around the custom call.
    flops = 2 * N * (d_gate * d_feat + T * d_feat * d_model + 3 * T * d_model * d_model
                     + 2 * T * T * d_model + 3 * T * d_model * d_model
                     + 2 * T * d_model + d_model)
    transcendentals = N * (d_feat + t_nhead * T * T + 3 * T)
    bytes_accessed = 4 * (int(x.size) + N) + 4 * sum(int(w.size) for w in weights)

    out = pl.pallas_call(
        kernel,
        out_shape=jax.ShapeDtypeStruct((N, 1, 1), jnp.float32),
        grid_spec=pltpu.PrefetchScalarGridSpec(
            num_scalar_prefetch=0,
            grid=(N,),
            in_specs=in_specs,
            out_specs=pl.BlockSpec((pl.Squeezed(), 1, 1), lambda b: (b, 0, 0)),
        ),
        compiler_params=pltpu.CompilerParams(dimension_semantics=("parallel",)),
        cost_estimate=pl.CostEstimate(flops=flops, transcendentals=transcendentals,
                                      bytes_accessed=bytes_accessed),
    )(src, gate_x, *weights)
    return out.reshape(N)


# ----------------------------------------------------------------------------- reference
def _master_ref(x, params, *, d_feat, d_model, t_nhead, gate_start, gate_end, beta):
    """Pure-JAX reference mirroring the PyTorch MASTER module (eval mode)."""
    src = x[:, :, :gate_start]
    gate_in = x[:, -1, gate_start:gate_end]
    g = jax.nn.softmax((gate_in @ params["wg"].T + params["bg"]) / beta, axis=-1) * d_feat
    src = src * g[:, None, :]
    z = src @ params["win"].T + params["bin"] + _pos_encoding(src.shape[1], d_model)

    # TAttention
    xn = _layernorm(z, params["ln1_g"], params["ln1_b"])
    q = xn @ params["wq"].T
    k = xn @ params["wk"].T
    v = xn @ params["wv"].T
    dim = d_model // t_nhead
    outs = []
    for i in range(t_nhead):
        lo = i * dim
        hi = d_model if i == t_nhead - 1 else (i + 1) * dim
        qh, kh, vh = q[..., lo:hi], k[..., lo:hi], v[..., lo:hi]
        a = jax.nn.softmax(jnp.einsum("ntd,nsd->nts", qh, kh), axis=-1)
        outs.append(jnp.einsum("nts,nsd->ntd", a, vh))
    att = jnp.concatenate(outs, axis=-1)
    xt = _layernorm(xn + att, params["ln2_g"], params["ln2_b"])
    h = jax.nn.relu(xt @ params["w1"].T + params["b1"])
    y = xt + (h @ params["w2"].T + params["b2"])

    # TemporalAttention
    ht = y @ params["wt"].T
    lam = jax.nn.softmax(jnp.einsum("ntd,nd->nt", ht, ht[:, -1, :]), axis=1)
    pooled = jnp.einsum("nt,ntd->nd", lam, y)
    return (pooled @ params["wout"].T + params["bout"]).squeeze(-1)


def init_params(key, *, d_feat, d_model, d_gate):
    ks = jax.random.split(key, 14)

    def w(k, out_dim, in_dim):
        s = 1.0 / math.sqrt(in_dim)
        return jax.random.uniform(k, (out_dim, in_dim), jnp.float32, -s, s)

    def b(k, dim, in_dim):
        s = 1.0 / math.sqrt(in_dim)
        return jax.random.uniform(k, (dim,), jnp.float32, -s, s)

    return {
        "wg": w(ks[0], d_feat, d_gate), "bg": b(ks[1], d_feat, d_gate),
        "win": w(ks[2], d_model, d_feat), "bin": b(ks[3], d_model, d_feat),
        "wq": w(ks[4], d_model, d_model),
        "wk": w(ks[5], d_model, d_model),
        "wv": w(ks[6], d_model, d_model),
        "ln1_g": jnp.ones((d_model,), jnp.float32),
        "ln1_b": jnp.zeros((d_model,), jnp.float32),
        "ln2_g": jnp.ones((d_model,), jnp.float32),
        "ln2_b": jnp.zeros((d_model,), jnp.float32),
        "w1": w(ks[7], d_model, d_model), "b1": b(ks[8], d_model, d_model),
        "w2": w(ks[9], d_model, d_model), "b2": b(ks[10], d_model, d_model),
        "wt": w(ks[11], d_model, d_model),
        "wout": w(ks[12], 1, d_model), "bout": b(ks[13], 1, d_model),
    }


if __name__ == "__main__":
    # Small shapes consistent with MASTER: N stocks, T lookback steps,
    # features = d_feat market features + d_gate gate features.
    N, T = 4, 8
    D_FEAT, D_GATE, D_MODEL, NHEAD, BETA = 16, 8, 32, 4, 5.0
    GATE_START, GATE_END = D_FEAT, D_FEAT + D_GATE

    key = jax.random.PRNGKey(0)
    kx, kp = jax.random.split(key)
    x = jax.random.normal(kx, (N, T, GATE_END), dtype=jnp.float32)
    params = init_params(kp, d_feat=D_FEAT, d_model=D_MODEL, d_gate=D_GATE)

    out = master_forward(x, params, d_feat=D_FEAT, d_model=D_MODEL, t_nhead=NHEAD,
                         gate_start=GATE_START, gate_end=GATE_END, beta=BETA)
    out = jax.block_until_ready(out)

    ref = _master_ref(x, params, d_feat=D_FEAT, d_model=D_MODEL, t_nhead=NHEAD,
                      gate_start=GATE_START, gate_end=GATE_END, beta=BETA)
    assert out.shape == (N,)
    assert jnp.allclose(out, ref, atol=2e-3, rtol=2e-3), "mismatch vs pure-JAX reference"
    print("KERNEL_OK")
</pallas_src>

<mosaic_0001>
module attributes {stable_mosaic.version = 11 : i64} {
  func.func @_master_kernel(%arg0: i32, %arg1: memref<1x8x16xf32, #tpu.memory_space<vmem>>, %arg2: memref<1x1x8xf32, #tpu.memory_space<vmem>>, %arg3: memref<8x16xf32, #tpu.memory_space<vmem>>, %arg4: memref<1x16xf32, #tpu.memory_space<vmem>>, %arg5: memref<16x32xf32, #tpu.memory_space<vmem>>, %arg6: memref<1x32xf32, #tpu.memory_space<vmem>>, %arg7: memref<8x32xf32, #tpu.memory_space<vmem>>, %arg8: memref<96x32xf32, #tpu.memory_space<vmem>>, %arg9: memref<1x32xf32, #tpu.memory_space<vmem>>, %arg10: memref<1x32xf32, #tpu.memory_space<vmem>>, %arg11: memref<1x32xf32, #tpu.memory_space<vmem>>, %arg12: memref<1x32xf32, #tpu.memory_space<vmem>>, %arg13: memref<32x32xf32, #tpu.memory_space<vmem>>, %arg14: memref<1x32xf32, #tpu.memory_space<vmem>>, %arg15: memref<32x32xf32, #tpu.memory_space<vmem>>, %arg16: memref<1x32xf32, #tpu.memory_space<vmem>>, %arg17: memref<32x32xf32, #tpu.memory_space<vmem>>, %arg18: memref<1x32xf32, #tpu.memory_space<vmem>>, %arg19: memref<1x1xf32, #tpu.memory_space<vmem>>, %arg20: memref<1x1x1xf32, #tpu.memory_space<vmem>>) attributes {dimension_semantics = [#tpu.dimension_semantics<parallel>], iteration_bounds = array<i64: 4>, scalar_prefetch = 0 : i64, scratch_operands = 0 : i64, tpu.core_type = #tpu.core_type<tc>, window_params = [{transform_indices = @transform_0, window_bounds = array<i64: 1, 8, 16>}, {transform_indices = @transform_1, window_bounds = array<i64: 1, 1, 8>}, {pipeline_mode = #tpu.pipeline_mode<synchronous>, transform_indices = @transform_2, window_bounds = array<i64: 8, 16>}, {pipeline_mode = #tpu.pipeline_mode<synchronous>, transform_indices = @transform_3, window_bounds = array<i64: 1, 16>}, {pipeline_mode = #tpu.pipeline_mode<synchronous>, transform_indices = @transform_4, window_bounds = array<i64: 16, 32>}, {pipeline_mode = #tpu.pipeline_mode<synchronous>, transform_indices = @transform_5, window_bounds = array<i64: 1, 32>}, {pipeline_mode = #tpu.pipeline_mode<synchronous>, transform_indices = @transform_6, window_bounds = array<i64: 8, 32>}, {pipeline_mode = #tpu.pipeline_mode<synchronous>, transform_indices = @transform_7, window_bounds = array<i64: 96, 32>}, {pipeline_mode = #tpu.pipeline_mode<synchronous>, transform_indices = @transform_8, window_bounds = array<i64: 1, 32>}, {pipeline_mode = #tpu.pipeline_mode<synchronous>, transform_indices = @transform_9, window_bounds = array<i64: 1, 32>}, {pipeline_mode = #tpu.pipeline_mode<synchronous>, transform_indices = @transform_10, window_bounds = array<i64: 1, 32>}, {pipeline_mode = #tpu.pipeline_mode<synchronous>, transform_indices = @transform_11, window_bounds = array<i64: 1, 32>}, {pipeline_mode = #tpu.pipeline_mode<synchronous>, transform_indices = @transform_12, window_bounds = array<i64: 32, 32>}, {pipeline_mode = #tpu.pipeline_mode<synchronous>, transform_indices = @transform_13, window_bounds = array<i64: 1, 32>}, {pipeline_mode = #tpu.pipeline_mode<synchronous>, transform_indices = @transform_14, window_bounds = array<i64: 32, 32>}, {pipeline_mode = #tpu.pipeline_mode<synchronous>, transform_indices = @transform_15, window_bounds = array<i64: 1, 32>}, {pipeline_mode = #tpu.pipeline_mode<synchronous>, transform_indices = @transform_16, window_bounds = array<i64: 32, 32>}, {pipeline_mode = #tpu.pipeline_mode<synchronous>, transform_indices = @transform_17, window_bounds = array<i64: 1, 32>}, {pipeline_mode = #tpu.pipeline_mode<synchronous>, transform_indices = @transform_18, window_bounds = array<i64: 1, 1>}, {transform_indices = @transform_19, window_bounds = array<i64: 1, 1, 1>}]} {
    %c0 = arith.constant 0 : index
    %c0_0 = arith.constant 0 : index
    %c0_1 = arith.constant 0 : index
    %0 = vector.load %arg2[%c0, %c0_0, %c0_1] : memref<1x1x8xf32, #tpu.memory_space<vmem>>, vector<1x1x8xf32>
    %1 = vector.shape_cast %0 : vector<1x1x8xf32> to vector<1x8xf32>
    %c0_2 = arith.constant 0 : index
    %c0_3 = arith.constant 0 : index
    %2 = vector.load %arg3[%c0_2, %c0_3] : memref<8x16xf32, #tpu.memory_space<vmem>>, vector<8x16xf32>
    %cst = arith.constant dense<0.000000e+00> : vector<1x16xf32>
    %3 = tpu.matmul %1, %2, %cst {dimension_numbers = #tpu.dot_dimension_numbers<[1], [0], [0], [1], [0, 0, 1, 1], [], []>} : vector<1x8xf32>, vector<8x16xf32>, vector<1x16xf32> -> vector<1x16xf32>
    %c0_4 = arith.constant 0 : index
    %c0_5 = arith.constant 0 : index
    %4 = vector.load %arg4[%c0_4, %c0_5] : memref<1x16xf32, #tpu.memory_space<vmem>>, vector<1x16xf32>
    %5 = arith.addf %3, %4 : vector<1x16xf32>
    %cst_6 = arith.constant 2.000000e-01 : f32
    %6 = vector.broadcast %cst_6 : f32 to vector<1x16xf32>
    %7 = arith.mulf %5, %6 : vector<1x16xf32>
    %cst_7 = arith.constant dense<0xFF800000> : vector<1xf32>
    %8 = vector.multi_reduction <maximumf>, %7, %cst_7 [1] : vector<1x16xf32> to vector<1xf32>
    %9 = vector.shape_cast %8 : vector<1xf32> to vector<1x1xf32>
    %10 = vector.broadcast %9 : vector<1x1xf32> to vector<1x16xf32>
    %11 = arith.subf %7, %10 : vector<1x16xf32>
    %12 = math.exp %11 : vector<1x16xf32>
    %cst_8 = arith.constant dense<0.000000e+00> : vector<1xf32>
    %13 = vector.multi_reduction <add>, %12, %cst_8 [1] : vector<1x16xf32> to vector<1xf32>
    %14 = vector.shape_cast %13 : vector<1xf32> to vector<1x1xf32>
    %15 = tpu.reciprocal %14 {approx = true} : vector<1x1xf32> -> vector<1x1xf32>
    %16 = arith.mulf %14, %15 : vector<1x1xf32>
    %cst_9 = arith.constant 2.000000e+00 : f32
    %17 = vector.broadcast %cst_9 : f32 to vector<1x1xf32>
    %18 = arith.subf %17, %16 : vector<1x1xf32>
    %19 = arith.mulf %15, %18 : vector<1x1xf32>
    %20 = vector.broadcast %19 : vector<1x1xf32> to vector<1x16xf32>
    %21 = arith.mulf %12, %20 : vector<1x16xf32>
    %cst_10 = arith.constant 1.600000e+01 : f32
    %22 = vector.broadcast %cst_10 : f32 to vector<1x16xf32>
    %23 = arith.mulf %22, %21 : vector<1x16xf32>
    %c0_11 = arith.constant 0 : index
    %c0_12 = arith.constant 0 : index
    %c0_13 = arith.constant 0 : index
    %24 = vector.load %arg1[%c0_11, %c0_12, %c0_13] : memref<1x8x16xf32, #tpu.memory_space<vmem>>, vector<1x8x16xf32>
    %25 = vector.shape_cast %24 : vector<1x8x16xf32> to vector<8x16xf32>
    %26 = vector.broadcast %23 : vector<1x16xf32> to vector<8x16xf32>
    %27 = arith.mulf %25, %26 : vector<8x16xf32>
    %c0_14 = arith.constant 0 : index
    %c0_15 = arith.constant 0 : index
    %28 = vector.load %arg5[%c0_14, %c0_15] : memref<16x32xf32, #tpu.memory_space<vmem>>, vector<16x32xf32>
    %cst_16 = arith.constant dense<0.000000e+00> : vector<8x32xf32>
    %29 = tpu.matmul %27, %28, %cst_16 {dimension_numbers = #tpu.dot_dimension_numbers<[1], [0], [0], [1], [0, 0, 1, 1], [], []>} : vector<8x16xf32>, vector<16x32xf32>, vector<8x32xf32> -> vector<8x32xf32>
    %c0_17 = arith.constant 0 : index
    %c0_18 = arith.constant 0 : index
    %30 = vector.load %arg6[%c0_17, %c0_18] : memref<1x32xf32, #tpu.memory_space<vmem>>, vector<1x32xf32>
    %31 = vector.broadcast %30 : vector<1x32xf32> to vector<8x32xf32>
    %32 = arith.addf %29, %31 : vector<8x32xf32>
    %c0_19 = arith.constant 0 : index
    %c0_20 = arith.constant 0 : index
    %33 = vector.load %arg7[%c0_19, %c0_20] : memref<8x32xf32, #tpu.memory_space<vmem>>, vector<8x32xf32>
    %34 = arith.addf %32, %33 : vector<8x32xf32>
    %c0_21 = arith.constant 0 : index
    %c0_22 = arith.constant 0 : index
    %35 = vector.load %arg9[%c0_21, %c0_22] : memref<1x32xf32, #tpu.memory_space<vmem>>, vector<1x32xf32>
    %c0_23 = arith.constant 0 : index
    %c0_24 = arith.constant 0 : index
    %36 = vector.load %arg10[%c0_23, %c0_24] : memref<1x32xf32, #tpu.memory_space<vmem>>, vector<1x32xf32>
    %cst_25 = arith.constant dense<0.000000e+00> : vector<8xf32>
    %37 = vector.multi_reduction <add>, %34, %cst_25 [1] : vector<8x32xf32> to vector<8xf32>
    %38 = vector.shape_cast %37 : vector<8xf32> to vector<8x1xf32>
    %cst_26 = arith.constant 3.200000e+01 : f32
    %39 = vector.broadcast %cst_26 : f32 to vector<8x1xf32>
    %40 = arith.divf %38, %39 : vector<8x1xf32>
    %41 = vector.broadcast %40 : vector<8x1xf32> to vector<8x32xf32>
    %42 = arith.subf %34, %41 : vector<8x32xf32>
    %43 = arith.mulf %42, %42 : vector<8x32xf32>
    %cst_27 = arith.constant dense<0.000000e+00> : vector<8xf32>
    %44 = vector.multi_reduction <add>, %43, %cst_27 [1] : vector<8x32xf32> to vector<8xf32>
    %45 = vector.shape_cast %44 : vector<8xf32> to vector<8x1xf32>
    %cst_28 = arith.constant 3.200000e+01 : f32
    %46 = vector.broadcast %cst_28 : f32 to vector<8x1xf32>
    %47 = arith.divf %45, %46 : vector<8x1xf32>
    %48 = vector.broadcast %40 : vector<8x1xf32> to vector<8x32xf32>
    %49 = arith.subf %34, %48 : vector<8x32xf32>
    %cst_29 = arith.constant 9.99999974E-6 : f32
    %50 = vector.broadcast %cst_29 : f32 to vector<8x1xf32>
    %51 = arith.addf %47, %50 : vector<8x1xf32>
    %52 = math.rsqrt %51 : vector<8x1xf32>
    %53 = vector.broadcast %52 : vector<8x1xf32> to vector<8x32xf32>
    %54 = arith.mulf %49, %53 : vector<8x32xf32>
    %55 = vector.broadcast %35 : vector<1x32xf32> to vector<8x32xf32>
    %56 = arith.mulf %54, %55 : vector<8x32xf32>
    %57 = vector.broadcast %36 : vector<1x32xf32> to vector<8x32xf32>
    %58 = arith.addf %56, %57 : vector<8x32xf32>
    %c0_30 = arith.constant 0 : index
    %c0_31 = arith.constant 0 : index
    %59 = vector.load %arg8[%c0_30, %c0_31] : memref<96x32xf32, #tpu.memory_space<vmem>>, vector<96x32xf32>
    %60 = tpu.transpose %58, [1, 0] : vector<8x32xf32> -> vector<32x8xf32>
    %cst_32 = arith.constant dense<0.000000e+00> : vector<96x8xf32>
    %61 = tpu.matmul %59, %60, %cst_32 {dimension_numbers = #tpu.dot_dimension_numbers<[1], [0], [0], [1], [0, 0, 1, 1], [], []>} : vector<96x32xf32>, vector<32x8xf32>, vector<96x8xf32> -> vector<96x8xf32>
    %62 = vector.extract_strided_slice %61 {offsets = [0, 0], sizes = [32, 8], strides = [1, 1]} : vector<96x8xf32> to vector<32x8xf32>
    %63 = vector.shape_cast %62 : vector<32x8xf32> to vector<4x8x8xf32>
    %64 = tpu.transpose %63, [0, 2, 1] : vector<4x8x8xf32> -> vector<4x8x8xf32>
    %65 = vector.extract_strided_slice %61 {offsets = [32, 0], sizes = [32, 8], strides = [1, 1]} : vector<96x8xf32> to vector<32x8xf32>
    %66 = vector.shape_cast %65 : vector<32x8xf32> to vector<4x8x8xf32>
    %67 = tpu.transpose %66, [0, 2, 1] : vector<4x8x8xf32> -> vector<4x8x8xf32>
    %68 = vector.extract_strided_slice %61 {offsets = [64, 0], sizes = [32, 8], strides = [1, 1]} : vector<96x8xf32> to vector<32x8xf32>
    %69 = vector.shape_cast %68 : vector<32x8xf32> to vector<4x8x8xf32>
    %70 = tpu.transpose %69, [0, 2, 1] : vector<4x8x8xf32> -> vector<4x8x8xf32>
    "tpu.trace_start"() <{level = 10 : i32, message = "htd,hsd->hts"}> : () -> ()
    %cst_33 = arith.constant dense<0.000000e+00> : vector<4x8x8xf32>
    %71 = tpu.matmul %64, %67, %cst_33 {dimension_numbers = #tpu.dot_dimension_numbers<[2], [2], [1], [1], [0, 0, 0, 1, 1, 1], [0], [0]>} : vector<4x8x8xf32>, vector<4x8x8xf32>, vector<4x8x8xf32> -> vector<4x8x8xf32>
    "tpu.trace_stop"() : () -> ()
    %cst_34 = arith.constant dense<0xFF800000> : vector<4x8xf32>
    %72 = vector.multi_reduction <maximumf>, %71, %cst_34 [2] : vector<4x8x8xf32> to vector<4x8xf32>
    %73 = vector.shape_cast %72 : vector<4x8xf32> to vector<4x8x1xf32>
    %74 = vector.broadcast %73 : vector<4x8x1xf32> to vector<4x8x8xf32>
    %75 = arith.subf %71, %74 : vector<4x8x8xf32>
    %76 = math.exp %75 : vector<4x8x8xf32>
    %cst_35 = arith.constant dense<0.000000e+00> : vector<4x8xf32>
    %77 = vector.multi_reduction <add>, %76, %cst_35 [2] : vector<4x8x8xf32> to vector<4x8xf32>
    %78 = vector.shape_cast %77 : vector<4x8xf32> to vector<4x8x1xf32>
    %79 = tpu.reciprocal %78 {approx = true} : vector<4x8x1xf32> -> vector<4x8x1xf32>
    %80 = arith.mulf %78, %79 : vector<4x8x1xf32>
    %cst_36 = arith.constant 2.000000e+00 : f32
    %81 = vector.broadcast %cst_36 : f32 to vector<4x8x1xf32>
    %82 = arith.subf %81, %80 : vector<4x8x1xf32>
    %83 = arith.mulf %79, %82 : vector<4x8x1xf32>
    %84 = vector.broadcast %83 : vector<4x8x1xf32> to vector<4x8x8xf32>
    %85 = arith.mulf %76, %84 : vector<4x8x8xf32>
    "tpu.trace_start"() <{level = 10 : i32, message = "hts,hsd->htd"}> : () -> ()
    %cst_37 = arith.constant dense<0.000000e+00> : vector<4x8x8xf32>
    %86 = tpu.matmul %85, %70, %cst_37 {dimension_numbers = #tpu.dot_dimension_numbers<[2], [1], [1], [2], [0, 0, 0, 1, 1, 2], [0], [0]>} : vector<4x8x8xf32>, vector<4x8x8xf32>, vector<4x8x8xf32> -> vector<4x8x8xf32>
    "tpu.trace_stop"() : () -> ()
    %87 = tpu.transpose %86, [0, 2, 1] : vector<4x8x8xf32> -> vector<4x8x8xf32>
    %88 = vector.shape_cast %87 : vector<4x8x8xf32> to vector<32x8xf32>
    %89 = tpu.transpose %88, [1, 0] : vector<32x8xf32> -> vector<8x32xf32>
    %90 = arith.addf %58, %89 : vector<8x32xf32>
    %c0_38 = arith.constant 0 : index
    %c0_39 = arith.constant 0 : index
    %91 = vector.load %arg11[%c0_38, %c0_39] : memref<1x32xf32, #tpu.memory_space<vmem>>, vector<1x32xf32>
    %c0_40 = arith.constant 0 : index
    %c0_41 = arith.constant 0 : index
    %92 = vector.load %arg12[%c0_40, %c0_41] : memref<1x32xf32, #tpu.memory_space<vmem>>, vector<1x32xf32>
    %cst_42 = arith.constant dense<0.000000e+00> : vector<8xf32>
    %93 = vector.multi_reduction <add>, %90, %cst_42 [1] : vector<8x32xf32> to vector<8xf32>
    %94 = vector.shape_cast %93 : vector<8xf32> to vector<8x1xf32>
    %cst_43 = arith.constant 3.200000e+01 : f32
    %95 = vector.broadcast %cst_43 : f32 to vector<8x1xf32>
    %96 = arith.divf %94, %95 : vector<8x1xf32>
    %97 = vector.broadcast %96 : vector<8x1xf32> to vector<8x32xf32>
    %98 = arith.subf %90, %97 : vector<8x32xf32>
    %99 = arith.mulf %98, %98 : vector<8x32xf32>
    %cst_44 = arith.constant dense<0.000000e+00> : vector<8xf32>
    %100 = vector.multi_reduction <add>, %99, %cst_44 [1] : vector<8x32xf32> to vector<8xf32>
    %101 = vector.shape_cast %100 : vector<8xf32> to vector<8x1xf32>
    %cst_45 = arith.constant 3.200000e+01 : f32
    %102 = vector.broadcast %cst_45 : f32 to vector<8x1xf32>
    %103 = arith.divf %101, %102 : vector<8x1xf32>
    %104 = vector.broadcast %96 : vector<8x1xf32> to vector<8x32xf32>
    %105 = arith.subf %90, %104 : vector<8x32xf32>
    %cst_46 = arith.constant 9.99999974E-6 : f32
    %106 = vector.broadcast %cst_46 : f32 to vector<8x1xf32>
    %107 = arith.addf %103, %106 : vector<8x1xf32>
    %108 = math.rsqrt %107 : vector<8x1xf32>
    %109 = vector.broadcast %108 : vector<8x1xf32> to vector<8x32xf32>
    %110 = arith.mulf %105, %109 : vector<8x32xf32>
    %111 = vector.broadcast %91 : vector<1x32xf32> to vector<8x32xf32>
    %112 = arith.mulf %110, %111 : vector<8x32xf32>
    %113 = vector.broadcast %92 : vector<1x32xf32> to vector<8x32xf32>
    %114 = arith.addf %112, %113 : vector<8x32xf32>
    %c0_47 = arith.constant 0 : index
    %c0_48 = arith.constant 0 : index
    %115 = vector.load %arg13[%c0_47, %c0_48] : memref<32x32xf32, #tpu.memory_space<vmem>>, vector<32x32xf32>
    %cst_49 = arith.constant dense<0.000000e+00> : vector<8x32xf32>
    %116 = tpu.matmul %114, %115, %cst_49 {dimension_numbers = #tpu.dot_dimension_numbers<[1], [0], [0], [1], [0, 0, 1, 1], [], []>} : vector<8x32xf32>, vector<32x32xf32>, vector<8x32xf32> -> vector<8x32xf32>
    %c0_50 = arith.constant 0 : index
    %c0_51 = arith.constant 0 : index
    %117 = vector.load %arg14[%c0_50, %c0_51] : memref<1x32xf32, #tpu.memory_space<vmem>>, vector<1x32xf32>
    %118 = vector.broadcast %117 : vector<1x32xf32> to vector<8x32xf32>
    %119 = arith.addf %116, %118 : vector<8x32xf32>
    %cst_52 = arith.constant 0.000000e+00 : f32
    %120 = vector.broadcast %cst_52 : f32 to vector<8x32xf32>
    %121 = arith.maximumf %119, %120 : vector<8x32xf32>
    %c0_53 = arith.constant 0 : index
    %c0_54 = arith.constant 0 : index
    %122 = vector.load %arg15[%c0_53, %c0_54] : memref<32x32xf32, #tpu.memory_space<vmem>>, vector<32x32xf32>
    %cst_55 = arith.constant dense<0.000000e+00> : vector<8x32xf32>
    %123 = tpu.matmul %121, %122, %cst_55 {dimension_numbers = #tpu.dot_dimension_numbers<[1], [0], [0], [1], [0, 0, 1, 1], [], []>} : vector<8x32xf32>, vector<32x32xf32>, vector<8x32xf32> -> vector<8x32xf32>
    %c0_56 = arith.constant 0 : index
    %c0_57 = arith.constant 0 : index
    %124 = vector.load %arg16[%c0_56, %c0_57] : memref<1x32xf32, #tpu.memory_space<vmem>>, vector<1x32xf32>
    %125 = vector.broadcast %124 : vector<1x32xf32> to vector<8x32xf32>
    %126 = arith.addf %123, %125 : vector<8x32xf32>
    %127 = arith.addf %114, %126 : vector<8x32xf32>
    %c0_58 = arith.constant 0 : index
    %c0_59 = arith.constant 0 : index
    %128 = vector.load %arg17[%c0_58, %c0_59] : memref<32x32xf32, #tpu.memory_space<vmem>>, vector<32x32xf32>
    %cst_60 = arith.constant dense<0.000000e+00> : vector<8x32xf32>
    %129 = tpu.matmul %127, %128, %cst_60 {dimension_numbers = #tpu.dot_dimension_numbers<[1], [0], [0], [1], [0, 0, 1, 1], [], []>} : vector<8x32xf32>, vector<32x32xf32>, vector<8x32xf32> -> vector<8x32xf32>
    %130 = vector.extract_strided_slice %129 {offsets = [7, 0], sizes = [1, 32], strides = [1, 1]} : vector<8x32xf32> to vector<1x32xf32>
    %131 = vector.broadcast %130 : vector<1x32xf32> to vector<8x32xf32>
    %132 = arith.mulf %129, %131 : vector<8x32xf32>
    %cst_61 = arith.constant dense<0.000000e+00> : vector<8xf32>
    %133 = vector.multi_reduction <add>, %132, %cst_61 [1] : vector<8x32xf32> to vector<8xf32>
    %134 = vector.shape_cast %133 : vector<8xf32> to vector<8x1xf32>
    %cst_62 = arith.constant dense<0xFF800000> : vector<1xf32>
    %135 = vector.multi_reduction <maximumf>, %134, %cst_62 [0] : vector<8x1xf32> to vector<1xf32>
    %136 = vector.shape_cast %135 : vector<1xf32> to vector<1x1xf32>
    %137 = vector.broadcast %136 : vector<1x1xf32> to vector<8x1xf32>
    %138 = arith.subf %134, %137 : vector<8x1xf32>
    %139 = math.exp %138 : vector<8x1xf32>
    %cst_63 = arith.constant dense<0.000000e+00> : vector<1xf32>
    %140 = vector.multi_reduction <add>, %139, %cst_63 [0] : vector<8x1xf32> to vector<1xf32>
    %141 = vector.shape_cast %140 : vector<1xf32> to vector<1x1xf32>
    %142 = tpu.reciprocal %141 {approx = true} : vector<1x1xf32> -> vector<1x1xf32>
    %143 = arith.mulf %141, %142 : vector<1x1xf32>
    %cst_64 = arith.constant 2.000000e+00 : f32
    %144 = vector.broadcast %cst_64 : f32 to vector<1x1xf32>
    %145 = arith.subf %144, %143 : vector<1x1xf32>
    %146 = arith.mulf %142, %145 : vector<1x1xf32>
    %147 = vector.broadcast %146 : vector<1x1xf32> to vector<8x1xf32>
    %148 = arith.mulf %139, %147 : vector<8x1xf32>
    %149 = vector.broadcast %148 : vector<8x1xf32> to vector<8x32xf32>
    %150 = arith.mulf %149, %127 : vector<8x32xf32>
    %cst_65 = arith.constant dense<0.000000e+00> : vector<32xf32>
    %151 = vector.multi_reduction <add>, %150, %cst_65 [0] : vector<8x32xf32> to vector<32xf32>
    %152 = vector.shape_cast %151 : vector<32xf32> to vector<1x32xf32>
    %c0_66 = arith.constant 0 : index
    %c0_67 = arith.constant 0 : index
    %153 = vector.load %arg18[%c0_66, %c0_67] : memref<1x32xf32, #tpu.memory_space<vmem>>, vector<1x32xf32>
    %154 = arith.mulf %152, %153 : vector<1x32xf32>
    %cst_68 = arith.constant dense<0.000000e+00> : vector<1xf32>
    %155 = vector.multi_reduction <add>, %154, %cst_68 [1] : vector<1x32xf32> to vector<1xf32>
    %156 = vector.shape_cast %155 : vector<1xf32> to vector<1x1xf32>
    %c0_69 = arith.constant 0 : index
    %c0_70 = arith.constant 0 : index
    %157 = vector.load %arg19[%c0_69, %c0_70] : memref<1x1xf32, #tpu.memory_space<vmem>>, vector<1x1xf32>
    %158 = arith.addf %156, %157 : vector<1x1xf32>
    %c0_71 = arith.constant 0 : index
    %c0_72 = arith.constant 0 : index
    %c0_73 = arith.constant 0 : index
    %159 = vector.load %arg20[%c0_71, %c0_72, %c0_73] : memref<1x1x1xf32, #tpu.memory_space<vmem>>, vector<1x1x1xf32>
    %160 = vector.shape_cast %159 : vector<1x1x1xf32> to vector<1x1xf32>
    %161 = vector.shape_cast %158 : vector<1x1xf32> to vector<1x1x1xf32>
    tpu.vector_store %arg20[%c0_71, %c0_72, %c0_73], %161 {strides = array<i32>} : memref<1x1x1xf32, #tpu.memory_space<vmem>>, vector<1x1x1xf32>,
    return
  }
  func.func @transform_0(%arg0: i32) -> (i32, i32, i32) {
    %c0_i32 = arith.constant 0 : i32
    %c0_i32_0 = arith.constant 0 : i32
    %c0_i32_1 = arith.constant 0 : i32
    return %arg0, %c0_i32, %c0_i32_0 : i32, i32, i32
  }
  func.func @transform_1(%arg0: i32) -> (i32, i32, i32) {
    %c0_i32 = arith.constant 0 : i32
    %c0_i32_0 = arith.constant 0 : i32
    %c0_i32_1 = arith.constant 0 : i32
    return %arg0, %c0_i32, %c0_i32_0 : i32, i32, i32
  }
  func.func @transform_2(%arg0: i32) -> (i32, i32) {
    %c0_i32 = arith.constant 0 : i32
    %c0_i32_0 = arith.constant 0 : i32
    %c0_i32_1 = arith.constant 0 : i32
    return %c0_i32, %c0_i32_0 : i32, i32
  }
  func.func @transform_3(%arg0: i32) -> (i32, i32) {
    %c0_i32 = arith.constant 0 : i32
    %c0_i32_0 = arith.constant 0 : i32
    %c0_i32_1 = arith.constant 0 : i32
    return %c0_i32, %c0_i32_0 : i32, i32
  }
  func.func @transform_4(%arg0: i32) -> (i32, i32) {
    %c0_i32 = arith.constant 0 : i32
    %c0_i32_0 = arith.constant 0 : i32
    %c0_i32_1 = arith.constant 0 : i32
    return %c0_i32, %c0_i32_0 : i32, i32
  }
  func.func @transform_5(%arg0: i32) -> (i32, i32) {
    %c0_i32 = arith.constant 0 : i32
    %c0_i32_0 = arith.constant 0 : i32
    %c0_i32_1 = arith.constant 0 : i32
    return %c0_i32, %c0_i32_0 : i32, i32
  }
  func.func @transform_6(%arg0: i32) -> (i32, i32) {
    %c0_i32 = arith.constant 0 : i32
    %c0_i32_0 = arith.constant 0 : i32
    %c0_i32_1 = arith.constant 0 : i32
    return %c0_i32, %c0_i32_0 : i32, i32
  }
  func.func @transform_7(%arg0: i32) -> (i32, i32) {
    %c0_i32 = arith.constant 0 : i32
    %c0_i32_0 = arith.constant 0 : i32
    %c0_i32_1 = arith.constant 0 : i32
    return %c0_i32, %c0_i32_0 : i32, i32
  }
  func.func @transform_8(%arg0: i32) -> (i32, i32) {
    %c0_i32 = arith.constant 0 : i32
    %c0_i32_0 = arith.constant 0 : i32
    %c0_i32_1 = arith.constant 0 : i32
    return %c0_i32, %c0_i32_0 : i32, i32
  }
  func.func @transform_9(%arg0: i32) -> (i32, i32) {
    %c0_i32 = arith.constant 0 : i32
    %c0_i32_0 = arith.constant 0 : i32
    %c0_i32_1 = arith.constant 0 : i32
    return %c0_i32, %c0_i32_0 : i32, i32
  }
  func.func @transform_10(%arg0: i32) -> (i32, i32) {
    %c0_i32 = arith.constant 0 : i32
    %c0_i32_0 = arith.constant 0 : i32
    %c0_i32_1 = arith.constant 0 : i32
    return %c0_i32, %c0_i32_0 : i32, i32
  }
  func.func @transform_11(%arg0: i32) -> (i32, i32) {
    %c0_i32 = arith.constant 0 : i32
    %c0_i32_0 = arith.constant 0 : i32
    %c0_i32_1 = arith.constant 0 : i32
    return %c0_i32, %c0_i32_0 : i32, i32
  }
  func.func @transform_12(%arg0: i32) -> (i32, i32) {
    %c0_i32 = arith.constant 0 : i32
    %c0_i32_0 = arith.constant 0 : i32
    %c0_i32_1 = arith.constant 0 : i32
    return %c0_i32, %c0_i32_0 : i32, i32
  }
  func.func @transform_13(%arg0: i32) -> (i32, i32) {
    %c0_i32 = arith.constant 0 : i32
    %c0_i32_0 = arith.constant 0 : i32
    %c0_i32_1 = arith.constant 0 : i32
    return %c0_i32, %c0_i32_0 : i32, i32
  }
  func.func @transform_14(%arg0: i32) -> (i32, i32) {
    %c0_i32 = arith.constant 0 : i32
    %c0_i32_0 = arith.constant 0 : i32
    %c0_i32_1 = arith.constant 0 : i32
    return %c0_i32, %c0_i32_0 : i32, i32
  }
  func.func @transform_15(%arg0: i32) -> (i32, i32) {
    %c0_i32 = arith.constant 0 : i32
    %c0_i32_0 = arith.constant 0 : i32
    %c0_i32_1 = arith.constant 0 : i32
    return %c0_i32, %c0_i32_0 : i32, i32
  }
  func.func @transform_16(%arg0: i32) -> (i32, i32) {
    %c0_i32 = arith.constant 0 : i32
    %c0_i32_0 = arith.constant 0 : i32
    %c0_i32_1 = arith.constant 0 : i32
    return %c0_i32, %c0_i32_0 : i32, i32
  }
  func.func @transform_17(%arg0: i32) -> (i32, i32) {
    %c0_i32 = arith.constant 0 : i32
    %c0_i32_0 = arith.constant 0 : i32
    %c0_i32_1 = arith.constant 0 : i32
    return %c0_i32, %c0_i32_0 : i32, i32
  }
  func.func @transform_18(%arg0: i32) -> (i32, i32) {
    %c0_i32 = arith.constant 0 : i32
    %c0_i32_0 = arith.constant 0 : i32
    %c0_i32_1 = arith.constant 0 : i32
    return %c0_i32, %c0_i32_0 : i32, i32
  }
  func.func @transform_19(%arg0: i32) -> (i32, i32, i32) {
    %c0_i32 = arith.constant 0 : i32
    %c0_i32_0 = arith.constant 0 : i32
    %c0_i32_1 = arith.constant 0 : i32
    return %arg0, %c0_i32, %c0_i32_0 : i32, i32, i32
  }
}

</mosaic_0001>

<llo_original>
// kernel: tpu_custom_call.1
$region0: #{tpu_custom_call.1}
  #allocation0 [shape = 'u32[]', space=smem, size = 0x4, offset = 0x4, fixed_abs, tag = 'smem constant byte address 0x4 - core index']
  #allocation1 [shape = 'u32[144,128]{1,0:T(1,128)}', space=vmem, size = 0x12000, scoped, tag = 'internal scratch']
  #allocation2 [shape = 'f32[1,1]{1,0:T(1,128)S(1)}', space=vmem, size = 0x200, scoped, tag = 'scoped memory for tpu_custom_call.1']
  %s0 = inlined_call_operand.vmem [shape: f32[4,8,16], index: 0, kind: input, shape index: {}]
  %s1 = inlined_call_operand.hbm [shape: f32[4,1,8], index: 1, kind: input, shape index: {}]
  %s2 = inlined_call_operand.hbm [shape: f32[8,16], index: 2, kind: input, shape index: {}]
  %s3 = inlined_call_operand.vmem [shape: f32[1,16], index: 3, kind: input, shape index: {}]
  %s4 = inlined_call_operand.vmem [shape: f32[16,32], index: 4, kind: input, shape index: {}]
  %s5 = inlined_call_operand.vmem [shape: f32[1,32], index: 5, kind: input, shape index: {}]
  %s6 = inlined_call_operand.vmem [shape: f32[8,32], index: 6, kind: input, shape index: {}]
  %s7 = inlined_call_operand.vmem [shape: f32[96,32], index: 7, kind: input, shape index: {}]
  %s8 = inlined_call_operand.vmem [shape: f32[1,32], index: 8, kind: input, shape index: {}]
  %s9 = inlined_call_operand.vmem [shape: f32[1,32], index: 9, kind: input, shape index: {}]
  %s10 = inlined_call_operand.vmem [shape: f32[1,32], index: 10, kind: input, shape index: {}]
  %s11 = inlined_call_operand.vmem [shape: f32[1,32], index: 11, kind: input, shape index: {}]
  %s12 = inlined_call_operand.vmem [shape: f32[32,32], index: 12, kind: input, shape index: {}]
  %s13 = inlined_call_operand.vmem [shape: f32[1,32], index: 13, kind: input, shape index: {}]
  %s14 = inlined_call_operand.vmem [shape: f32[32,32], index: 14, kind: input, shape index: {}]
  %s15 = inlined_call_operand.vmem [shape: f32[1,32], index: 15, kind: input, shape index: {}]
  %s16 = inlined_call_operand.vmem [shape: f32[32,32], index: 16, kind: input, shape index: {}]
  %s17 = inlined_call_operand.vmem [shape: f32[1,32], index: 17, kind: input, shape index: {}]
  %s18 = inlined_call_operand.<no memory space> [shape: f32[1,1], index: 18, kind: input, shape index: {}]
  %s19 = inlined_call_operand.vmem [shape: f32[4,1,1], index: 19, kind: output, shape index: {}]
  %s20 = sld [smem:[#allocation0]]
  $region117: #{tpu_custom_call.1} parent=0
    _
  %s22 = ssub.s32 1, %s20
  %s23 = scalar_select 0, %s22, %s20
  %v24 = vstv %s18
  %25 = vst [vmem:[#allocation2] sm:$0x1] %v24
  $region1: #{tpu_custom_call.1} parent=0
    #allocation3 [shape = 'u8[1024]{0}', space=vmem, size = 0x400, scoped, tag = 'input window, operand 1']
    #allocation4 [shape = 's32[2]{0}', space=sflag, size = 0x8, scoped, tag = 'scoped memory for tpu_custom_call.1']
    #allocation5 [shape = 'u8[4096]{0}', space=vmem, size = 0x1000, scoped, tag = 'input window, operand 2, single buffered']
    #allocation6 [shape = 's32[1]{0}', space=sflag, size = 0x4, scoped, tag = 'scoped memory for tpu_custom_call.1']
    %26 = vsyncpa [#allocation4], 0
    %s27 = scalar_lea.sflag [#allocation4], 1
    %28 = vsyncpa %s27, 0
    %29 = vsyncpa [#allocation6], 0
    loop: start=0, step=1, limit=6
    $region2: #{tpu_custom_call.1} parent=1 // loop_pre_header
      _
    $region3: #{tpu_custom_call.1} parent=1 // loop_header
      %s31 = sphi 0, %s35
      %p32 = scmp.ge.s32.totalorder %s31, 6
      %s41 = sphi 0, %s43
      %s44 = sphi 0, %s41
      %s45 = sphi 0, %s44
      %s61 = sphi 0, %s45
      %s67 = sphi 0, %s69
      %s70 = sphi 0, %s67
      %s71 = sphi 0, %s70
      %s87 = sphi 0, %s71
      %s91 = sphi 0, %s91
      %s93 = sphi 0, %s91
      %s94 = sphi 0, %s93
      %s108 = sphi 0, %s94
      %s112 = sphi 0, %s112
      %s114 = sphi 0, %s112
      %s115 = sphi 0, %s114
      %s129 = sphi 0, %s115
      %s133 = sphi 0, %s133
      %s135 = sphi 0, %s133
      %s136 = sphi 0, %s135
      %s150 = sphi 0, %s136
      %s154 = sphi 0, %s154
      %s156 = sphi 0, %s154
      %s157 = sphi 0, %s156
      %s171 = sphi 0, %s157
      %s175 = sphi 0, %s175
      %s177 = sphi 0, %s175
      %s178 = sphi 0, %s177
      %s192 = sphi 0, %s178
      %s196 = sphi 0, %s196
      %s198 = sphi 0, %s196
      %s199 = sphi 0, %s198
      %s213 = sphi 0, %s199
      %s217 = sphi 0, %s217
      %s219 = sphi 0, %s217
      %s220 = sphi 0, %s219
      %s234 = sphi 0, %s220
      %s238 = sphi 0, %s238
      %s240 = sphi 0, %s238
      %s241 = sphi 0, %s240
      %s255 = sphi 0, %s241
      %s259 = sphi 0, %s259
      %s261 = sphi 0, %s259
      %s262 = sphi 0, %s261
      %s276 = sphi 0, %s262
      %s280 = sphi 0, %s280
      %s282 = sphi 0, %s280
      %s283 = sphi 0, %s282
      %s297 = sphi 0, %s283
      %s301 = sphi 0, %s301
      %s303 = sphi 0, %s301
      %s304 = sphi 0, %s303
      %s318 = sphi 0, %s304
      %s322 = sphi 0, %s322
      %s324 = sphi 0, %s322
      %s325 = sphi 0, %s324
      %s339 = sphi 0, %s325
      %s343 = sphi 0, %s343
      %s345 = sphi 0, %s343
      %s346 = sphi 0, %s345
      %s360 = sphi 0, %s346
      %s364 = sphi 0, %s364
      %s366 = sphi 0, %s364
      %s367 = sphi 0, %s366
      %s381 = sphi 0, %s367
      %s385 = sphi 0, %s385
      %s387 = sphi 0, %s385
      %s388 = sphi 0, %s387
      %s402 = sphi 0, %s388
      %s406 = sphi 0, %s406
      %s408 = sphi 0, %s406
      %s409 = sphi 0, %s408
      %s423 = sphi 0, %s409
      %s427 = sphi 0, %s427
      %s429 = sphi 0, %s427
      %s430 = sphi 0, %s429
      %s444 = sphi 0, %s430
      %s450 = sphi 0, %s452
      %s453 = sphi 0, %s450
      %s454 = sphi 0, %s453
      %s470 = sphi 0, %s454
    $region4: #{tpu_custom_call.1} parent=1 // loop_header_branch
      %34 = sbr.rel (%p32) target = $region8
    $region5: #{tpu_custom_call.1} parent=1 // loop_body
      %s36 = ssub.s32 %s31, 1
      %s37 = ssub.s32 %s31, 2
      %s38 = sadd.s32 %s31, 1
      %s39 = ssub.s32 %s31, %s38
      %p40 = scmp.eq.s32.totalorder %s39, 0
      %s42 = sadd.s32 %s41, 1
      %s43 = scalar_select %p40, %s41, %s42
      %p46 = pneg %p40
      %p47 = scmp.eq.s32.totalorder %s31, 3
      %p48 = por %p46, %p47
      %p49 = scmp.ne.s32.totalorder %s41, %s44
      %p50 = scmp.eq.s32.totalorder %s31, 0
      %p51 = por %p49, %p50
      %p52 = scmp.ne.s32.totalorder %s41, %s44
      %p53 = scmp.eq.s32.totalorder %s36, 3
      %p54 = por %p52, %p53
      %p55 = scmp.ne.s32.totalorder %s44, %s45
      %p56 = scmp.eq.s32.totalorder %s36, 0
      %p57 = por %p55, %p56
      %p58 = scmp.ne.s32.totalorder %s44, %s45
      %p59 = scmp.eq.s32.totalorder %s37, 3
      %p60 = por %p58, %p59
      %p62 = scmp.ne.s32.totalorder %s45, %s61
      %p63 = scmp.eq.s32.totalorder %s37, 0
      %p64 = por %p62, %p63
      %s65 = ssub.s32 %s31, %s38
      %p66 = scmp.eq.s32.totalorder %s65, 0
      %s68 = sadd.s32 %s67, 1
      %s69 = scalar_select %p66, %s67, %s68
      %p72 = pneg %p66
      %p73 = scmp.eq.s32.totalorder %s31, 3
      %p74 = por %p72, %p73
      %p75 = scmp.ne.s32.totalorder %s67, %s70
      %p76 = scmp.eq.s32.totalorder %s31, 0
      %p77 = por %p75, %p76
      %p78 = scmp.ne.s32.totalorder %s67, %s70
      %p79 = scmp.eq.s32.totalorder %s36, 3
      %p80 = por %p78, %p79
      %p81 = scmp.ne.s32.totalorder %s70, %s71
      %p82 = scmp.eq.s32.totalorder %s36, 0
      %p83 = por %p81, %p82
      %p84 = scmp.ne.s32.totalorder %s70, %s71
      %p85 = scmp.eq.s32.totalorder %s37, 3
      %p86 = por %p84, %p85
      %p88 = scmp.ne.s32.totalorder %s71, %s87
      %p89 = scmp.eq.s32.totalorder %s37, 0
      %p90 = por %p88, %p89
      %s92 = sadd.s32 %s91, 1
      %p95 = scmp.eq.s32.totalorder %s31, 3
      %p96 = scmp.ne.s32.totalorder %s91, %s93
      %p97 = scmp.eq.s32.totalorder %s31, 0
      %p98 = por %p96, %p97
      %p99 = scmp.ne.s32.totalorder %s91, %s93
      %p100 = scmp.eq.s32.totalorder %s36, 3
      %p101 = por %p99, %p100
      %p102 = scmp.ne.s32.totalorder %s93, %s94
      %p103 = scmp.eq.s32.totalorder %s36, 0
      %p104 = por %p102, %p103
      %p105 = scmp.ne.s32.totalorder %s93, %s94
      %p106 = scmp.eq.s32.totalorder %s37, 3
      %p107 = por %p105, %p106
      %p109 = scmp.ne.s32.totalorder %s94, %s108
      %p110 = scmp.eq.s32.totalorder %s37, 0
      %p111 = por %p109, %p110
      %s113 = sadd.s32 %s112, 1
      %p116 = scmp.eq.s32.totalorder %s31, 3
      %p117 = scmp.ne.s32.totalorder %s112, %s114
      %p118 = scmp.eq.s32.totalorder %s31, 0
      %p119 = por %p117, %p118
      %p120 = scmp.ne.s32.totalorder %s112, %s114
      %p121 = scmp.eq.s32.totalorder %s36, 3
      %p122 = por %p120, %p121
      %p123 = scmp.ne.s32.totalorder %s114, %s115
      %p124 = scmp.eq.s32.totalorder %s36, 0
      %p125 = por %p123, %p124
      %p126 = scmp.ne.s32.totalorder %s114, %s115
      %p127 = scmp.eq.s32.totalorder %s37, 3
      %p128 = por %p126, %p127
      %p130 = scmp.ne.s32.totalorder %s115, %s129
      %p131 = scmp.eq.s32.totalorder %s37, 0
      %p132 = por %p130, %p131
      %s134 = sadd.s32 %s133, 1
      %p137 = scmp.eq.s32.totalorder %s31, 3
      %p138 = scmp.ne.s32.totalorder %s133, %s135
      %p139 = scmp.eq.s32.totalorder %s31, 0
      %p140 = por %p138, %p139
      %p141 = scmp.ne.s32.totalorder %s133, %s135
      %p142 = scmp.eq.s32.totalorder %s36, 3
      %p143 = por %p141, %p142
      %p144 = scmp.ne.s32.totalorder %s135, %s136
      %p145 = scmp.eq.s32.totalorder %s36, 0
      %p146 = por %p144, %p145
      %p147 = scmp.ne.s32.totalorder %s135, %s136
      %p148 = scmp.eq.s32.totalorder %s37, 3
      %p149 = por %p147, %p148
      %p151 = scmp.ne.s32.totalorder %s136, %s150
      %p152 = scmp.eq.s32.totalorder %s37, 0
      %p153 = por %p151, %p152
      %s155 = sadd.s32 %s154, 1
      %p158 = scmp.eq.s32.totalorder %s31, 3
      %p159 = scmp.ne.s32.totalorder %s154, %s156
      %p160 = scmp.eq.s32.totalorder %s31, 0
      %p161 = por %p159, %p160
      %p162 = scmp.ne.s32.totalorder %s154, %s156
      %p163 = scmp.eq.s32.totalorder %s36, 3
      %p164 = por %p162, %p163
      %p165 = scmp.ne.s32.totalorder %s156, %s157
      %p166 = scmp.eq.s32.totalorder %s36, 0
      %p167 = por %p165, %p166
      %p168 = scmp.ne.s32.totalorder %s156, %s157
      %p169 = scmp.eq.s32.totalorder %s37, 3
      %p170 = por %p168, %p169
      %p172 = scmp.ne.s32.totalorder %s157, %s171
      %p173 = scmp.eq.s32.totalorder %s37, 0
      %p174 = por %p172, %p173
      %s176 = sadd.s32 %s175, 1
      %p179 = scmp.eq.s32.totalorder %s31, 3
      %p180 = scmp.ne.s32.totalorder %s175, %s177
      %p181 = scmp.eq.s32.totalorder %s31, 0
      %p182 = por %p180, %p181
      %p183 = scmp.ne.s32.totalorder %s175, %s177
      %p184 = scmp.eq.s32.totalorder %s36, 3
      %p185 = por %p183, %p184
      %p186 = scmp.ne.s32.totalorder %s177, %s178
      %p187 = scmp.eq.s32.totalorder %s36, 0
      %p188 = por %p186, %p187
      %p189 = scmp.ne.s32.totalorder %s177, %s178
      %p190 = scmp.eq.s32.totalorder %s37, 3
      %p191 = por %p189, %p190
      %p193 = scmp.ne.s32.totalorder %s178, %s192
      %p194 = scmp.eq.s32.totalorder %s37, 0
      %p195 = por %p193, %p194
      %s197 = sadd.s32 %s196, 1
      %p200 = scmp.eq.s32.totalorder %s31, 3
      %p201 = scmp.ne.s32.totalorder %s196, %s198
      %p202 = scmp.eq.s32.totalorder %s31, 0
      %p203 = por %p201, %p202
      %p204 = scmp.ne.s32.totalorder %s196, %s198
      %p205 = scmp.eq.s32.totalorder %s36, 3
      %p206 = por %p204, %p205
      %p207 = scmp.ne.s32.totalorder %s198, %s199
      %p208 = scmp.eq.s32.totalorder %s36, 0
      %p209 = por %p207, %p208
      %p210 = scmp.ne.s32.totalorder %s198, %s199
      %p211 = scmp.eq.s32.totalorder %s37, 3
      %p212 = por %p210, %p211
      %p214 = scmp.ne.s32.totalorder %s199, %s213
      %p215 = scmp.eq.s32.totalorder %s37, 0
      %p216 = por %p214, %p215
      %s218 = sadd.s32 %s217, 1
      %p221 = scmp.eq.s32.totalorder %s31, 3
      %p222 = scmp.ne.s32.totalorder %s217, %s219
      %p223 = scmp.eq.s32.totalorder %s31, 0
      %p224 = por %p222, %p223
      %p225 = scmp.ne.s32.totalorder %s217, %s219
      %p226 = scmp.eq.s32.totalorder %s36, 3
      %p227 = por %p225, %p226
      %p228 = scmp.ne.s32.totalorder %s219, %s220
      %p229 = scmp.eq.s32.totalorder %s36, 0
      %p230 = por %p228, %p229
      %p231 = scmp.ne.s32.totalorder %s219, %s220
      %p232 = scmp.eq.s32.totalorder %s37, 3
      %p233 = por %p231, %p232
      %p235 = scmp.ne.s32.totalorder %s220, %s234
      %p236 = scmp.eq.s32.totalorder %s37, 0
      %p237 = por %p235, %p236
      %s239 = sadd.s32 %s238, 1
      %p242 = scmp.eq.s32.totalorder %s31, 3
      %p243 = scmp.ne.s32.totalorder %s238, %s240
      %p244 = scmp.eq.s32.totalorder %s31, 0
      %p245 = por %p243, %p244
      %p246 = scmp.ne.s32.totalorder %s238, %s240
      %p247 = scmp.eq.s32.totalorder %s36, 3
      %p248 = por %p246, %p247
      %p249 = scmp.ne.s32.totalorder %s240, %s241
      %p250 = scmp.eq.s32.totalorder %s36, 0
      %p251 = por %p249, %p250
      %p252 = scmp.ne.s32.totalorder %s240, %s241
      %p253 = scmp.eq.s32.totalorder %s37, 3
      %p254 = por %p252, %p253
      %p256 = scmp.ne.s32.totalorder %s241, %s255
      %p257 = scmp.eq.s32.totalorder %s37, 0
      %p258 = por %p256, %p257
      %s260 = sadd.s32 %s259, 1
      %p263 = scmp.eq.s32.totalorder %s31, 3
      %p264 = scmp.ne.s32.totalorder %s259, %s261
      %p265 = scmp.eq.s32.totalorder %s31, 0
      %p266 = por %p264, %p265
      %p267 = scmp.ne.s32.totalorder %s259, %s261
      %p268 = scmp.eq.s32.totalorder %s36, 3
      %p269 = por %p267, %p268
      %p270 = scmp.ne.s32.totalorder %s261, %s262
      %p271 = scmp.eq.s32.totalorder %s36, 0
      %p272 = por %p270, %p271
      %p273 = scmp.ne.s32.totalorder %s261, %s262
      %p274 = scmp.eq.s32.totalorder %s37, 3
      %p275 = por %p273, %p274
      %p277 = scmp.ne.s32.totalorder %s262, %s276
      %p278 = scmp.eq.s32.totalorder %s37, 0
      %p279 = por %p277, %p278
      %s281 = sadd.s32 %s280, 1
      %p284 = scmp.eq.s32.totalorder %s31, 3
      %p285 = scmp.ne.s32.totalorder %s280, %s282
      %p286 = scmp.eq.s32.totalorder %s31, 0
      %p287 = por %p285, %p286
      %p288 = scmp.ne.s32.totalorder %s280, %s282
      %p289 = scmp.eq.s32.totalorder %s36, 3
      %p290 = por %p288, %p289
      %p291 = scmp.ne.s32.totalorder %s282, %s283
      %p292 = scmp.eq.s32.totalorder %s36, 0
      %p293 = por %p291, %p292
      %p294 = scmp.ne.s32.totalorder %s282, %s283
      %p295 = scmp.eq.s32.totalorder %s37, 3
      %p296 = por %p294, %p295
      %p298 = scmp.ne.s32.totalorder %s283, %s297
      %p299 = scmp.eq.s32.totalorder %s37, 0
      %p300 = por %p298, %p299
      %s302 = sadd.s32 %s301, 1
      %p305 = scmp.eq.s32.totalorder %s31, 3
      %p306 = scmp.ne.s32.totalorder %s301, %s303
      %p307 = scmp.eq.s32.totalorder %s31, 0
      %p308 = por %p306, %p307
      %p309 = scmp.ne.s32.totalorder %s301, %s303
      %p310 = scmp.eq.s32.totalorder %s36, 3
      %p311 = por %p309, %p310
      %p312 = scmp.ne.s32.totalorder %s303, %s304
      %p313 = scmp.eq.s32.totalorder %s36, 0
      %p314 = por %p312, %p313
      %p315 = scmp.ne.s32.totalorder %s303, %s304
      %p316 = scmp.eq.s32.totalorder %s37, 3
      %p317 = por %p315, %p316
      %p319 = scmp.ne.s32.totalorder %s304, %s318
      %p320 = scmp.eq.s32.totalorder %s37, 0
      %p321 = por %p319, %p320
      %s323 = sadd.s32 %s322, 1
      %p326 = scmp.eq.s32.totalorder %s31, 3
      %p327 = scmp.ne.s32.totalorder %s322, %s324
      %p328 = scmp.eq.s32.totalorder %s31, 0
      %p329 = por %p327, %p328
      %p330 = scmp.ne.s32.totalorder %s322, %s324
      %p331 = scmp.eq.s32.totalorder %s36, 3
      %p332 = por %p330, %p331
      %p333 = scmp.ne.s32.totalorder %s324, %s325
      %p334 = scmp.eq.s32.totalorder %s36, 0
      %p335 = por %p333, %p334
      %p336 = scmp.ne.s32.totalorder %s324, %s325
      %p337 = scmp.eq.s32.totalorder %s37, 3
      %p338 = por %p336, %p337
      %p340 = scmp.ne.s32.totalorder %s325, %s339
      %p341 = scmp.eq.s32.totalorder %s37, 0
      %p342 = por %p340, %p341
      %s344 = sadd.s32 %s343, 1
      %p347 = scmp.eq.s32.totalorder %s31, 3
      %p348 = scmp.ne.s32.totalorder %s343, %s345
      %p349 = scmp.eq.s32.totalorder %s31, 0
      %p350 = por %p348, %p349
      %p351 = scmp.ne.s32.totalorder %s343, %s345
      %p352 = scmp.eq.s32.totalorder %s36, 3
      %p353 = por %p351, %p352
      %p354 = scmp.ne.s32.totalorder %s345, %s346
      %p355 = scmp.eq.s32.totalorder %s36, 0
      %p356 = por %p354, %p355
      %p357 = scmp.ne.s32.totalorder %s345, %s346
      %p358 = scmp.eq.s32.totalorder %s37, 3
      %p359 = por %p357, %p358
      %p361 = scmp.ne.s32.totalorder %s346, %s360
      %p362 = scmp.eq.s32.totalorder %s37, 0
      %p363 = por %p361, %p362
      %s365 = sadd.s32 %s364, 1
      %p368 = scmp.eq.s32.totalorder %s31, 3
      %p369 = scmp.ne.s32.totalorder %s364, %s366
      %p370 = scmp.eq.s32.totalorder %s31, 0
      %p371 = por %p369, %p370
      %p372 = scmp.ne.s32.totalorder %s364, %s366
      %p373 = scmp.eq.s32.totalorder %s36, 3
      %p374 = por %p372, %p373
      %p375 = scmp.ne.s32.totalorder %s366, %s367
      %p376 = scmp.eq.s32.totalorder %s36, 0
      %p377 = por %p375, %p376
      %p378 = scmp.ne.s32.totalorder %s366, %s367
      %p379 = scmp.eq.s32.totalorder %s37, 3
      %p380 = por %p378, %p379
      %p382 = scmp.ne.s32.totalorder %s367, %s381
      %p383 = scmp.eq.s32.totalorder %s37, 0
      %p384 = por %p382, %p383
      %s386 = sadd.s32 %s385, 1
      %p389 = scmp.eq.s32.totalorder %s31, 3
      %p390 = scmp.ne.s32.totalorder %s385, %s387
      %p391 = scmp.eq.s32.totalorder %s31, 0
      %p392 = por %p390, %p391
      %p393 = scmp.ne.s32.totalorder %s385, %s387
      %p394 = scmp.eq.s32.totalorder %s36, 3
      %p395 = por %p393, %p394
      %p396 = scmp.ne.s32.totalorder %s387, %s388
      %p397 = scmp.eq.s32.totalorder %s36, 0
      %p398 = por %p396, %p397
      %p399 = scmp.ne.s32.totalorder %s387, %s388
      %p400 = scmp.eq.s32.totalorder %s37, 3
      %p401 = por %p399, %p400
      %p403 = scmp.ne.s32.totalorder %s388, %s402
      %p404 = scmp.eq.s32.totalorder %s37, 0
      %p405 = por %p403, %p404
      %s407 = sadd.s32 %s406, 1
      %p410 = scmp.eq.s32.totalorder %s31, 3
      %p411 = scmp.ne.s32.totalorder %s406, %s408
      %p412 = scmp.eq.s32.totalorder %s31, 0
      %p413 = por %p411, %p412
      %p414 = scmp.ne.s32.totalorder %s406, %s408
      %p415 = scmp.eq.s32.totalorder %s36, 3
      %p416 = por %p414, %p415
      %p417 = scmp.ne.s32.totalorder %s408, %s409
      %p418 = scmp.eq.s32.totalorder %s36, 0
      %p419 = por %p417, %p418
      %p420 = scmp.ne.s32.totalorder %s408, %s409
      %p421 = scmp.eq.s32.totalorder %s37, 3
      %p422 = por %p420, %p421
      %p424 = scmp.ne.s32.totalorder %s409, %s423
      %p425 = scmp.eq.s32.totalorder %s37, 0
      %p426 = por %p424, %p425
      %s428 = sadd.s32 %s427, 1
      %p431 = scmp.eq.s32.totalorder %s31, 3
      %p432 = scmp.ne.s32.totalorder %s427, %s429
      %p433 = scmp.eq.s32.totalorder %s31, 0
      %p434 = por %p432, %p433
      %p435 = scmp.ne.s32.totalorder %s427, %s429
      %p436 = scmp.eq.s32.totalorder %s36, 3
      %p437 = por %p435, %p436
      %p438 = scmp.ne.s32.totalorder %s429, %s430
      %p439 = scmp.eq.s32.totalorder %s36, 0
      %p440 = por %p438, %p439
      %p441 = scmp.ne.s32.totalorder %s429, %s430
      %p442 = scmp.eq.s32.totalorder %s37, 3
      %p443 = por %p441, %p442
      %p445 = scmp.ne.s32.totalorder %s430, %s444
      %p446 = scmp.eq.s32.totalorder %s37, 0
      %p447 = por %p445, %p446
      %s448 = ssub.s32 %s31, %s38
      %p449 = scmp.eq.s32.totalorder %s448, 0
      %s451 = sadd.s32 %s450, 1
      %s452 = scalar_select %p449, %s450, %s451
      %p455 = pneg %p449
      %p456 = scmp.eq.s32.totalorder %s31, 3
      %p457 = por %p455, %p456
      %p458 = scmp.ne.s32.totalorder %s450, %s453
      %p459 = scmp.eq.s32.totalorder %s31, 0
      %p460 = por %p458, %p459
      %p461 = scmp.ne.s32.totalorder %s450, %s453
      %p462 = scmp.eq.s32.totalorder %s36, 3
      %p463 = por %p461, %p462
      %p464 = scmp.ne.s32.totalorder %s453, %s454
      %p465 = scmp.eq.s32.totalorder %s36, 0
      %p466 = por %p464, %p465
      %p467 = scmp.ne.s32.totalorder %s453, %s454
      %p468 = scmp.eq.s32.totalorder %s37, 3
      %p469 = por %p467, %p468
      %p471 = scmp.ne.s32.totalorder %s454, %s470
      %p472 = scmp.eq.s32.totalorder %s37, 0
      %p473 = por %p471, %p472
      %p474 = scmp.le.s32.totalorder 1, %s31
      %p475 = scmp.lt.s32.totalorder %s31, 5
      %p476 = pnand %p474, %p475
      %p477 = pneg %p476
      // Predicated region
      $region9: #{tpu_custom_call.1} parent=5 // pred_check
        _
      $region10: #{tpu_custom_call.1} parent=5 // pred_check_branch
        %479 = sbr.rel (%p476) target = $region12
      $region11: #{tpu_custom_call.1} parent=5 // pred_region
        %s480 = ssub.s32 %s31, 1
        // Predicated region
        $region13: #{tpu_custom_call.1} parent=11 // pred_check
          %p481 = pneg %p104
        $region14: #{tpu_custom_call.1} parent=11 // pred_check_branch
          %483 = sbr.rel (%p481) target = $region16
        $region15: #{tpu_custom_call.1} parent=11 // pred_region
          %s485 = ssub.s32 128, 128
          %486 = vsyncadd [#allocation6], %s485
          %s488 = sshll.u32 [#allocation5], 4
          %s489 = int_to_ptr.vmem [resolvable:$true] %s488
          %491 = dma.hbm_to_vmem [thread:$0]  %s2, 128, %s489, [#allocation6]
        $region16: #{tpu_custom_call.1} parent=11 // pred_fallthru
          _
        // Predicated region
        $region17: #{tpu_custom_call.1} parent=11 // pred_check
          %p492 = pneg %p125
        $region18: #{tpu_custom_call.1} parent=11 // pred_check_branch
          %494 = sbr.rel (%p492) target = $region20
        $region19: #{tpu_custom_call.1} parent=11 // pred_region
          _
        $region20: #{tpu_custom_call.1} parent=11 // pred_fallthru
          _
        // Predicated region
        $region21: #{tpu_custom_call.1} parent=11 // pred_check
          %p495 = pneg %p146
        $region22: #{tpu_custom_call.1} parent=11 // pred_check_branch
          %497 = sbr.rel (%p495) target = $region24
        $region23: #{tpu_custom_call.1} parent=11 // pred_region
          _
        $region24: #{tpu_custom_call.1} parent=11 // pred_fallthru
          _
        // Predicated region
        $region25: #{tpu_custom_call.1} parent=11 // pred_check
          %p498 = pneg %p167
        $region26: #{tpu_custom_call.1} parent=11 // pred_check_branch
          %500 = sbr.rel (%p498) target = $region28
        $region27: #{tpu_custom_call.1} parent=11 // pred_region
          _
        $region28: #{tpu_custom_call.1} parent=11 // pred_fallthru
          _
        // Predicated region
        $region29: #{tpu_custom_call.1} parent=11 // pred_check
          %p501 = pneg %p188
        $region30: #{tpu_custom_call.1} parent=11 // pred_check_branch
          %503 = sbr.rel (%p501) target = $region32
        $region31: #{tpu_custom_call.1} parent=11 // pred_region
          _
        $region32: #{tpu_custom_call.1} parent=11 // pred_fallthru
          _
        // Predicated region
        $region33: #{tpu_custom_call.1} parent=11 // pred_check
          %p504 = pneg %p209
        $region34: #{tpu_custom_call.1} parent=11 // pred_check_branch
          %506 = sbr.rel (%p504) target = $region36
        $region35: #{tpu_custom_call.1} parent=11 // pred_region
          _
        $region36: #{tpu_custom_call.1} parent=11 // pred_fallthru
          _
        // Predicated region
        $region37: #{tpu_custom_call.1} parent=11 // pred_check
          %p507 = pneg %p230
        $region38: #{tpu_custom_call.1} parent=11 // pred_check_branch
          %509 = sbr.rel (%p507) target = $region40
        $region39: #{tpu_custom_call.1} parent=11 // pred_region
          _
        $region40: #{tpu_custom_call.1} parent=11 // pred_fallthru
          _
        // Predicated region
        $region41: #{tpu_custom_call.1} parent=11 // pred_check
          %p510 = pneg %p251
        $region42: #{tpu_custom_call.1} parent=11 // pred_check_branch
          %512 = sbr.rel (%p510) target = $region44
        $region43: #{tpu_custom_call.1} parent=11 // pred_region
          _
        $region44: #{tpu_custom_call.1} parent=11 // pred_fallthru
          _
        // Predicated region
        $region45: #{tpu_custom_call.1} parent=11 // pred_check
          %p513 = pneg %p272
        $region46: #{tpu_custom_call.1} parent=11 // pred_check_branch
          %515 = sbr.rel (%p513) target = $region48
        $region47: #{tpu_custom_call.1} parent=11 // pred_region
          _
        $region48: #{tpu_custom_call.1} parent=11 // pred_fallthru
          _
        // Predicated region
        $region49: #{tpu_custom_call.1} parent=11 // pred_check
          %p516 = pneg %p293
        $region50: #{tpu_custom_call.1} parent=11 // pred_check_branch
          %518 = sbr.rel (%p516) target = $region52
        $region51: #{tpu_custom_call.1} parent=11 // pred_region
          _
        $region52: #{tpu_custom_call.1} parent=11 // pred_fallthru
          _
        // Predicated region
        $region53: #{tpu_custom_call.1} parent=11 // pred_check
          %p519 = pneg %p314
        $region54: #{tpu_custom_call.1} parent=11 // pred_check_branch
          %521 = sbr.rel (%p519) target = $region56
        $region55: #{tpu_custom_call.1} parent=11 // pred_region
          _
        $region56: #{tpu_custom_call.1} parent=11 // pred_fallthru
          _
        // Predicated region
        $region57: #{tpu_custom_call.1} parent=11 // pred_check
          %p522 = pneg %p335
        $region58: #{tpu_custom_call.1} parent=11 // pred_check_branch
          %524 = sbr.rel (%p522) target = $region60
        $region59: #{tpu_custom_call.1} parent=11 // pred_region
          _
        $region60: #{tpu_custom_call.1} parent=11 // pred_fallthru
          _
        // Predicated region
        $region61: #{tpu_custom_call.1} parent=11 // pred_check
          %p525 = pneg %p356
        $region62: #{tpu_custom_call.1} parent=11 // pred_check_branch
          %527 = sbr.rel (%p525) target = $region64
        $region63: #{tpu_custom_call.1} parent=11 // pred_region
          _
        $region64: #{tpu_custom_call.1} parent=11 // pred_fallthru
          _
        // Predicated region
        $region65: #{tpu_custom_call.1} parent=11 // pred_check
          %p528 = pneg %p377
        $region66: #{tpu_custom_call.1} parent=11 // pred_check_branch
          %530 = sbr.rel (%p528) target = $region68
        $region67: #{tpu_custom_call.1} parent=11 // pred_region
          _
        $region68: #{tpu_custom_call.1} parent=11 // pred_fallthru
          _
        // Predicated region
        $region69: #{tpu_custom_call.1} parent=11 // pred_check
          %p531 = pneg %p398
        $region70: #{tpu_custom_call.1} parent=11 // pred_check_branch
          %533 = sbr.rel (%p531) target = $region72
        $region71: #{tpu_custom_call.1} parent=11 // pred_region
          _
        $region72: #{tpu_custom_call.1} parent=11 // pred_fallthru
          _
        // Predicated region
        $region73: #{tpu_custom_call.1} parent=11 // pred_check
          %p534 = pneg %p419
        $region74: #{tpu_custom_call.1} parent=11 // pred_check_branch
          %536 = sbr.rel (%p534) target = $region76
        $region75: #{tpu_custom_call.1} parent=11 // pred_region
          _
        $region76: #{tpu_custom_call.1} parent=11 // pred_fallthru
          _
        // Predicated region
        $region77: #{tpu_custom_call.1} parent=11 // pred_check
          %p537 = pneg %p440
        $region78: #{tpu_custom_call.1} parent=11 // pred_check_branch
          %539 = sbr.rel (%p537) target = $region80
        $region79: #{tpu_custom_call.1} parent=11 // pred_region
          _
        $region80: #{tpu_custom_call.1} parent=11 // pred_fallthru
          _
      $region12: #{tpu_custom_call.1} parent=5 // pred_fallthru
        _
      %p540 = scmp.lt.s32.totalorder %s31, 4
      // Predicated region
      $region81: #{tpu_custom_call.1} parent=5 // pred_check
        %p541 = pneg %p540
      $region82: #{tpu_custom_call.1} parent=5 // pred_check_branch
        %543 = sbr.rel (%p541) target = $region84
      $region83: #{tpu_custom_call.1} parent=5 // pred_region
        // Predicated region
        $region85: #{tpu_custom_call.1} parent=83 // pred_check
          %p544 = pneg %p51
        $region86: #{tpu_custom_call.1} parent=83 // pred_check_branch
          %546 = sbr.rel (%p544) target = $region88
        $region87: #{tpu_custom_call.1} parent=83 // pred_region
          %p547 = scmp.lt.s32.totalorder %s31, 3
          %s548 = scalar_select %p547, %s31, 3
          %s549 = smul.addr %s548, 8
          %s550 = scalar_lea.vmem %s0, %s549
        $region88: #{tpu_custom_call.1} parent=83 // pred_fallthru
          _
        // Predicated region
        $region89: #{tpu_custom_call.1} parent=83 // pred_check
          %p551 = pneg %p77
        $region90: #{tpu_custom_call.1} parent=83 // pred_check_branch
          %553 = sbr.rel (%p551) target = $region92
        $region91: #{tpu_custom_call.1} parent=83 // pred_region
          %s554 = sand.u32 %s67, 1
          %s555 = scalar_lea.sflag [#allocation4], %s554
          %s556 = sand.u32 %s67, 1
          %s557 = scalar_lea.vmem [#allocation3], %s556
          %s559 = ssub.s32 16, 16
          %560 = vsyncadd %s555, %s559
          %s561 = smul.addr %s31, 16
          %s562 = scalar_lea.hbm %s1, %s561
          %s564 = sshll.u32 %s557, 4
          %s565 = int_to_ptr.vmem [resolvable:$true] %s564
          %567 = dma.hbm_to_vmem [thread:$0]  %s562, 16, %s565, %s555
        $region92: #{tpu_custom_call.1} parent=83 // pred_fallthru
          _
      $region84: #{tpu_custom_call.1} parent=5 // pred_fallthru
        _
      %p568 = scmp.le.s32.totalorder 1, %s31
      %p569 = scmp.lt.s32.totalorder %s31, 5
      %p570 = pnand %p568, %p569
      %p571 = pneg %p570
      // Predicated region
      $region93: #{tpu_custom_call.1} parent=5 // pred_check
        _
      $region94: #{tpu_custom_call.1} parent=5 // pred_check_branch
        %573 = sbr.rel (%p570) target = $region96
      $region95: #{tpu_custom_call.1} parent=5 // pred_region
        %s574 = ssub.s32 %s31, 1
        %s575 = sand.u32 %s70, 1
        %s576 = scalar_lea.sflag [#allocation4], %s575
        %s577 = sand.u32 %s70, 1
        %s578 = scalar_lea.vmem [#allocation3], %s577
        // Predicated region
        $region97: #{tpu_custom_call.1} parent=95 // pred_check
          %p579 = pneg %p83
        $region98: #{tpu_custom_call.1} parent=95 // pred_check_branch
          %581 = sbr.rel (%p579) target = $region100
        $region99: #{tpu_custom_call.1} parent=95 // pred_region
          %582 = dma.done %s576, 16
        $region100: #{tpu_custom_call.1} parent=95 // pred_fallthru
          _
        // Predicated region
        $region101: #{tpu_custom_call.1} parent=95 // pred_check
          %p583 = pneg %p104
        $region102: #{tpu_custom_call.1} parent=95 // pred_check_branch
          %585 = sbr.rel (%p583) target = $region104
        $region103: #{tpu_custom_call.1} parent=95 // pred_region
          %586 = dma.done [#allocation6], 128
        $region104: #{tpu_custom_call.1} parent=95 // pred_fallthru
          _
        %p587 = scmp.lt.s32.totalorder %s36, 3
        %s588 = scalar_select %p587, %s36, 3
        %s589 = smul.addr %s588, 8
        %s590 = scalar_lea.vmem %s0, %s589
        %p591 = pneg %p57
        %p592 = pneg %p54
        %s593 = sand.u32 %s70, 1
        %s594 = scalar_lea.sflag [#allocation4], %s593
        %s595 = sand.u32 %s70, 1
        %s596 = scalar_lea.vmem [#allocation3], %s595
        %p597 = pneg %p83
        %p598 = pneg %p80
        %p599 = pneg %p104
        %p600 = pneg %p101
        %p601 = pneg %p125
        %p602 = pneg %p122
        %p603 = pneg %p146
        %p604 = pneg %p143
        %p605 = pneg %p167
        %p606 = pneg %p164
        %p607 = pneg %p188
        %p608 = pneg %p185
        %p609 = pneg %p209
        %p610 = pneg %p206
        %p611 = pneg %p230
        %p612 = pneg %p227
        %p613 = pneg %p251
        %p614 = pneg %p248
        %p615 = pneg %p272
        %p616 = pneg %p269
        %p617 = pneg %p293
        %p618 = pneg %p290
        %p619 = pneg %p314
        %p620 = pneg %p311
        %p621 = pneg %p335
        %p622 = pneg %p332
        %p623 = pneg %p356
        %p624 = pneg %p353
        %p625 = pneg %p377
        %p626 = pneg %p374
        %p627 = pneg %p398
        %p628 = pneg %p395
        %p629 = pneg %p419
        %p630 = pneg %p416
        %p631 = pneg %p440
        %p632 = pneg %p437
        %p633 = pneg %p466
        %p634 = pneg %p463
        %p635 = scmp.lt.s32.totalorder %s36, 3
        %s636 = scalar_select %p635, %s36, 3
        %s637 = scalar_lea.vmem %s19, %s636
        %p638 = scmp.lt.s32.totalorder %s36, 3
        %s639 = scalar_select %p638, %s36, 3
        %s640 = smul.addr %s639, 8
        %s641 = scalar_lea.vmem %s0, %s640
        %p642 = scmp.lt.s32.totalorder %s36, 3
        %s643 = scalar_select %p642, %s36, 3
        %s644 = scalar_lea.vmem %s19, %s643
        %v645 = vld [vmem:[%s578] sm:$0x1]
        %v646 = vld [vmem:[#allocation5] sm:$0xff]
        %v647 = vld [vmem:[%s3] sm:$0x1]
        %vm648 = vcmask 64512
        %v650 = vsel %vm648, %v645, 0
        %652 = vmatprep.subr.mxu0 0.0
        %653 = vmatpush1.msra.mxu0 %v646
        %654 = vmatprep.subr.mxu0 0.0
        %655 = vmatpush1.msra.mxu0 0.0
        %656 = vmatprep.subr.mxu0 0.0
        %657 = vmatpush1.msra.mxu0 0.0
        %658 = vmatprep.subr.mxu0 0.0
        %659 = vmatpush1.msra.mxu0 0.0
        %660 = vmatprep.subr.mxu0 0.0
        %661 = vmatpush1.msra.mxu0 0.0
        %662 = vmatprep.subr.mxu0 0.0
        %663 = vmatpush1.msra.mxu0 0.0
        %664 = vmatprep.subr.mxu0 0.0
        %665 = vmatpush1.msra.mxu0 0.0
        %666 = vmatprep.subr.mxu0 0.0
        %667 = vmatpush1.msra.mxu0 0.0
        %668 = vmatprep.subr.mxu0 0.0
        %669 = vmatpush1.msra.mxu0 0.0
        %670 = vmatprep.subr.mxu0 0.0
        %671 = vmatpush1.msra.mxu0 0.0
        %672 = vmatprep.subr.mxu0 0.0
        %673 = vmatpush1.msra.mxu0 0.0
        %674 = vmatprep.subr.mxu0 0.0
        %675 = vmatpush1.msra.mxu0 0.0
        %676 = vmatprep.subr.mxu0 0.0
        %677 = vmatpush1.msra.mxu0 0.0
        %678 = vmatprep.subr.mxu0 0.0
        %679 = vmatpush1.msra.mxu0 0.0
        %680 = vmatprep.subr.mxu0 0.0
        %681 = vmatpush1.msra.mxu0 0.0
        %682 = vmatprep.subr.mxu0 0.0
        %683 = vmatpush1.msra.mxu0 0.0
        %684 = vmatprep.subr.mxu0 0.0
        %685 = vmatpush1.msra.mxu0 0.0
        %686 = vmatprep.subr.mxu0 0.0
        %687 = vmatpush1.msra.mxu0 0.0
        %688 = vmatprep.subr.mxu0 0.0
        %689 = vmatpush1.msra.mxu0 0.0
        %690 = vmatprep.subr.mxu0 0.0
        %691 = vmatpush1.msra.mxu0 0.0
        %692 = vmatprep.subr.mxu0 0.0
        %693 = vmatpush1.msra.mxu0 0.0
        %694 = vmatprep.subr.mxu0 0.0
        %695 = vmatpush1.msra.mxu0 0.0
        %696 = vmatprep.subr.mxu0 0.0
        %697 = vmatpush1.msra.mxu0 0.0
        %698 = vmatprep.subr.mxu0 0.0
        %699 = vmatpush1.msra.mxu0 0.0
        %700 = vmatprep.subr.mxu0 0.0
        %701 = vmatpush1.msra.mxu0 0.0
        %702 = vmatprep.subr.mxu0 0.0
        %703 = vmatpush1.msra.mxu0 0.0
        %704 = vmatprep.subr.mxu0 0.0
        %705 = vmatpush1.msra.mxu0 0.0
        %706 = vmatprep.subr.mxu0 0.0
        %707 = vmatpush1.msra.mxu0 0.0
        %708 = vmatprep.subr.mxu0 0.0
        %709 = vmatpush1.msra.mxu0 0.0
        %710 = vmatprep.subr.mxu0 0.0
        %711 = vmatpush1.msra.mxu0 0.0
        %712 = vmatprep.subr.mxu0 0.0
        %713 = vmatpush1.msra.mxu0 0.0
        %714 = vmatprep.subr.mxu0 0.0
        %715 = vmatpush1.msra.mxu0 0.0
        %716 = vmatprep.mubr.f32.mxu0 0.0
        %717 = vmatmul.mubr.f32.gmra.mrb[0].mxu0 %v650
        %v718 = vpop.f32.mrb[0].mxu0
        %v719 = vadd.f32 %v647, %v718
        %v720 = vpop.f32.mrb[0].mxu0
        %721 = vdwg.mxu0
        %v722 = vmul.f32 %v719, 0.2
        %vm723 = vcmask 122880
        %v724 = vsel %vm723, %v722, -inf
        %725 = vmax.xlane.f32.xlu0 %v724
        %v726 = vpop.xlane.xlu0 %725
        %v727 = vsub.f32 %v722, %v726
        %v728 = vmul.f32 %v727, 1.442695
        %v729 = vpow.pop %v728
        %v730 = vsel %vm723, %v729, 0.0
        %731 = vadd.xlane.f32.xlu0 %v730
        %v732 = vpop.xlane.xlu0 %731
        %v733 = vrcp.pop %v732
        %v734 = vmul.f32 %v732, %v733
        %v735 = vsub.f32 2.0, %v734
        %v736 = vmul.f32 %v733, %v735
        %v737 = vmul.f32 %v729, %v736
        %v738 = vmul.f32 %v737, 16.0
        %v739 = vld [vmem:[%s641] sm:$0xff]
        %v740 = vlaneseq
        %v741 = vshrl.u32 %v740, 7
        %v742 = vsub.s32 0, %v741
        %v743 = vrot.slane %v738, %v742
        %v744 = vmul.f32 %v739, %v743
        %v745 = vld [vmem:[%s4] sm:$0xff]
        %v746 = vld [vmem:[%s4 + $0x8] sm:$0xff]
        %v747 = vld [vmem:[%s5] sm:$0x1]
        %v749 = vlaneseq
        %v750 = vshrl.u32 %v749, 7
        %v751 = vsub.s32 0, %v750
        %v752 = vrot.slane %v747, %v751
        %vm754 = vcmask 130048
        %v756 = vsel %vm754, %v744, 0
        %758 = vmatprep.subr.mxu0 0.0
        %759 = vmatpush1.msra.mxu0 %v745
        %760 = vmatprep.subr.mxu0 0.0
        %761 = vmatpush1.msra.mxu0 %v746
        %762 = vmatprep.subr.mxu0 0.0
        %763 = vmatpush1.msra.mxu0 0.0
        %764 = vmatprep.subr.mxu0 0.0
        %765 = vmatpush1.msra.mxu0 0.0
        %766 = vmatprep.subr.mxu0 0.0
        %767 = vmatpush1.msra.mxu0 0.0
        %768 = vmatprep.subr.mxu0 0.0
        %769 = vmatpush1.msra.mxu0 0.0
        %770 = vmatprep.subr.mxu0 0.0
        %771 = vmatpush1.msra.mxu0 0.0
        %772 = vmatprep.subr.mxu0 0.0
        %773 = vmatpush1.msra.mxu0 0.0
        %774 = vmatprep.subr.mxu0 0.0
        %775 = vmatpush1.msra.mxu0 0.0
        %776 = vmatprep.subr.mxu0 0.0
        %777 = vmatpush1.msra.mxu0 0.0
        %778 = vmatprep.subr.mxu0 0.0
        %779 = vmatpush1.msra.mxu0 0.0
        %780 = vmatprep.subr.mxu0 0.0
        %781 = vmatpush1.msra.mxu0 0.0
        %782 = vmatprep.subr.mxu0 0.0
        %783 = vmatpush1.msra.mxu0 0.0
        %784 = vmatprep.subr.mxu0 0.0
        %785 = vmatpush1.msra.mxu0 0.0
        %786 = vmatprep.subr.mxu0 0.0
        %787 = vmatpush1.msra.mxu0 0.0
        %788 = vmatprep.subr.mxu0 0.0
        %789 = vmatpush1.msra.mxu0 0.0
        %790 = vmatprep.subr.mxu0 0.0
        %791 = vmatpush1.msra.mxu0 0.0
        %792 = vmatprep.subr.mxu0 0.0
        %793 = vmatpush1.msra.mxu0 0.0
        %794 = vmatprep.subr.mxu0 0.0
        %795 = vmatpush1.msra.mxu0 0.0
        %796 = vmatprep.subr.mxu0 0.0
        %797 = vmatpush1.msra.mxu0 0.0
        %798 = vmatprep.subr.mxu0 0.0
        %799 = vmatpush1.msra.mxu0 0.0
        %800 = vmatprep.subr.mxu0 0.0
        %801 = vmatpush1.msra.mxu0 0.0
        %802 = vmatprep.subr.mxu0 0.0
        %803 = vmatpush1.msra.mxu0 0.0
        %804 = vmatprep.subr.mxu0 0.0
        %805 = vmatpush1.msra.mxu0 0.0
        %806 = vmatprep.subr.mxu0 0.0
        %807 = vmatpush1.msra.mxu0 0.0
        %808 = vmatprep.subr.mxu0 0.0
        %809 = vmatpush1.msra.mxu0 0.0
        %810 = vmatprep.subr.mxu0 0.0
        %811 = vmatpush1.msra.mxu0 0.0
        %812 = vmatprep.subr.mxu0 0.0
        %813 = vmatpush1.msra.mxu0 0.0
        %814 = vmatprep.subr.mxu0 0.0
        %815 = vmatpush1.msra.mxu0 0.0
        %816 = vmatprep.subr.mxu0 0.0
        %817 = vmatpush1.msra.mxu0 0.0
        %818 = vmatprep.subr.mxu0 0.0
        %819 = vmatpush1.msra.mxu0 0.0
        %820 = vmatprep.subr.mxu0 0.0
        %821 = vmatpush1.msra.mxu0 0.0
        %822 = vmatprep.mubr.f32.mxu0 0.0
        %823 = vmatmul.mubr.f32.gmra.mrb[0].mxu0 %v756
        %v824 = vpop.f32.mrb[0].mxu0
        %v825 = vadd.f32 %v752, %v824
        %v826 = vpop.f32.mrb[0].mxu0
        %827 = vdwg.mxu0
        %v828 = vld [vmem:[%s6] sm:$0xff]
        %v829 = vadd.f32 %v825, %v828
        %v830 = vld [vmem:[%s8] sm:$0x1]
        %v831 = vld [vmem:[%s9] sm:$0x1]
        %vm832 = vcmask 261120
        %v833 = vsel %vm832, %v829, 0.0
        %834 = vadd.xlane.f32.xlu0 %v833
        %v835 = vpop.xlane.xlu0 %834
        %v836 = vrcp.pop 32.0
        %v837 = vmul.f32 %v835, %v836
        %v838 = vsub.f32 %v829, %v837
        %v839 = vmul.f32 %v838, %v838
        %v840 = vsel %vm832, %v839, 0.0
        %841 = vadd.xlane.f32.xlu0 %v840
        %v842 = vpop.xlane.xlu0 %841
        %v843 = vmul.f32 %v842, %v836
        %v844 = vadd.f32 %v843, 1e-05
        %v845 = vrsqrt.pop %v844
        %v846 = vmul.f32 %v838, %v845
        %v848 = vlaneseq
        %v849 = vshrl.u32 %v848, 7
        %v850 = vsub.s32 0, %v849
        %v851 = vrot.slane %v830, %v850
        %v853 = vmul.f32 %v846, %v851
        %v855 = vlaneseq
        %v856 = vshrl.u32 %v855, 7
        %v857 = vsub.s32 0, %v856
        %v858 = vrot.slane %v831, %v857
        %v860 = vadd.f32 %v853, %v858
        %v861 = vld [vmem:[%s7] sm:$0xff]
        %v862 = vld [vmem:[%s7 + $0x8] sm:$0xff]
        %v863 = vld [vmem:[%s7 + $0x10] sm:$0xff]
        %v864 = vld [vmem:[%s7 + $0x18] sm:$0xff]
        %v865 = vld [vmem:[%s7 + $0x20] sm:$0xff]
        %v866 = vld [vmem:[%s7 + $0x28] sm:$0xff]
        %v867 = vld [vmem:[%s7 + $0x30] sm:$0xff]
        %v868 = vld [vmem:[%s7 + $0x38] sm:$0xff]
        %v869 = vld [vmem:[%s7 + $0x40] sm:$0xff]
        %v870 = vld [vmem:[%s7 + $0x48] sm:$0xff]
        %v871 = vld [vmem:[%s7 + $0x50] sm:$0xff]
        %v872 = vld [vmem:[%s7 + $0x58] sm:$0xff]
        %v874 = vsel %vm832, %v861, 0
        %v877 = vsel %vm832, %v862, 0
        %v880 = vsel %vm832, %v863, 0
        %v883 = vsel %vm832, %v864, 0
        %v886 = vsel %vm832, %v865, 0
        %v889 = vsel %vm832, %v866, 0
        %v892 = vsel %vm832, %v867, 0
        %v895 = vsel %vm832, %v868, 0
        %v898 = vsel %vm832, %v869, 0
        %v901 = vsel %vm832, %v870, 0
        %v904 = vsel %vm832, %v871, 0
        %v907 = vsel %vm832, %v872, 0
        %v910 = vsel %vm832, %v860, 0
        %912 = vmatprep.subr.mxu0 0.0
        %913 = vmatpush1.xpose.msra.mxu0 %v910
        %914 = vmatprep.subr.mxu0 0.0
        %915 = vmatpush1.xpose.msra.mxu0 0.0
        %916 = vmatprep.subr.mxu0 0.0
        %917 = vmatpush1.xpose.msra.mxu0 0.0
        %918 = vmatprep.subr.mxu0 0.0
        %919 = vmatpush1.xpose.msra.mxu0 0.0
        %920 = vmatprep.subr.mxu0 0.0
        %921 = vmatpush1.xpose.msra.mxu0 0.0
        %922 = vmatprep.subr.mxu0 0.0
        %923 = vmatpush1.xpose.msra.mxu0 0.0
        %924 = vmatprep.subr.mxu0 0.0
        %925 = vmatpush1.xpose.msra.mxu0 0.0
        %926 = vmatprep.subr.mxu0 0.0
        %927 = vmatpush1.xpose.msra.mxu0 0.0
        %928 = vmatprep.subr.mxu0 0.0
        %929 = vmatpush1.xpose.msra.mxu0 0.0
        %930 = vmatprep.subr.mxu0 0.0
        %931 = vmatpush1.xpose.msra.mxu0 0.0
        %932 = vmatprep.subr.mxu0 0.0
        %933 = vmatpush1.xpose.msra.mxu0 0.0
        %934 = vmatprep.subr.mxu0 0.0
        %935 = vmatpush1.xpose.msra.mxu0 0.0
        %936 = vmatprep.subr.mxu0 0.0
        %937 = vmatpush1.xpose.msra.mxu0 0.0
        %938 = vmatprep.subr.mxu0 0.0
        %939 = vmatpush1.xpose.msra.mxu0 0.0
        %940 = vmatprep.subr.mxu0 0.0
        %941 = vmatpush1.xpose.msra.mxu0 0.0
        %942 = vmatprep.subr.mxu0 0.0
        %943 = vmatpush1.xpose.msra.mxu0 0.0
        %944 = vmatprep.subr.mxu0 0.0
        %945 = vmatpush1.xpose.msra.mxu0 0.0
        %946 = vmatprep.subr.mxu0 0.0
        %947 = vmatpush1.xpose.msra.mxu0 0.0
        %948 = vmatprep.subr.mxu0 0.0
        %949 = vmatpush1.xpose.msra.mxu0 0.0
        %950 = vmatprep.subr.mxu0 0.0
        %951 = vmatpush1.xpose.msra.mxu0 0.0
        %952 = vmatprep.subr.mxu0 0.0
        %953 = vmatpush1.xpose.msra.mxu0 0.0
        %954 = vmatprep.subr.mxu0 0.0
        %955 = vmatpush1.xpose.msra.mxu0 0.0
        %956 = vmatprep.subr.mxu0 0.0
        %957 = vmatpush1.xpose.msra.mxu0 0.0
        %958 = vmatprep.subr.mxu0 0.0
        %959 = vmatpush1.xpose.msra.mxu0 0.0
        %960 = vmatprep.subr.mxu0 0.0
        %961 = vmatpush1.xpose.msra.mxu0 0.0
        %962 = vmatprep.subr.mxu0 0.0
        %963 = vmatpush1.xpose.msra.mxu0 0.0
        %964 = vmatprep.subr.mxu0 0.0
        %965 = vmatpush1.xpose.msra.mxu0 0.0
        %966 = vmatprep.subr.mxu0 0.0
        %967 = vmatpush1.xpose.msra.mxu0 0.0
        %968 = vmatprep.subr.mxu0 0.0
        %969 = vmatpush1.xpose.msra.mxu0 0.0
        %970 = vmatprep.subr.mxu0 0.0
        %971 = vmatpush1.xpose.msra.mxu0 0.0
        %972 = vmatprep.subr.mxu0 0.0
        %973 = vmatpush1.xpose.msra.mxu0 0.0
        %974 = vmatprep.subr.mxu0 0.0
        %975 = vmatpush1.xpose.msra.mxu0 0.0
        %976 = vmatprep.mubr.f32.mxu0 0.0
        %977 = vmatmul.mubr.f32.gmra.mrb[0].mxu0 %v874
        %v978 = vpop.f32.mrb[0].mxu0
        %v979 = vadd.f32 0.0, %v978
        %v980 = vpop.f32.mrb[0].mxu0
        %981 = vmatprep.mubr.f32.mxu0 0.0
        %982 = vmatmul.mubr.f32.gmra.mrb[0].mxu0 %v877
        %v983 = vpop.f32.mrb[0].mxu0
        %v984 = vadd.f32 0.0, %v983
        %v985 = vpop.f32.mrb[0].mxu0
        %986 = vmatprep.mubr.f32.mxu0 0.0
        %987 = vmatmul.mubr.f32.gmra.mrb[0].mxu0 %v880
        %v988 = vpop.f32.mrb[0].mxu0
        %v989 = vadd.f32 0.0, %v988
        %v990 = vpop.f32.mrb[0].mxu0
        %991 = vmatprep.mubr.f32.mxu0 0.0
        %992 = vmatmul.mubr.f32.gmra.mrb[0].mxu0 %v883
        %v993 = vpop.f32.mrb[0].mxu0
        %v994 = vadd.f32 0.0, %v993
        %v995 = vpop.f32.mrb[0].mxu0
        %996 = vmatprep.mubr.f32.mxu0 0.0
        %997 = vmatmul.mubr.f32.gmra.mrb[0].mxu0 %v886
        %v998 = vpop.f32.mrb[0].mxu0
        %v999 = vadd.f32 0.0, %v998
        %v1000 = vpop.f32.mrb[0].mxu0
        %1001 = vmatprep.mubr.f32.mxu0 0.0
        %1002 = vmatmul.mubr.f32.gmra.mrb[0].mxu0 %v889
        %v1003 = vpop.f32.mrb[0].mxu0
        %v1004 = vadd.f32 0.0, %v1003
        %v1005 = vpop.f32.mrb[0].mxu0
        %1006 = vmatprep.mubr.f32.mxu0 0.0
        %1007 = vmatmul.mubr.f32.gmra.mrb[0].mxu0 %v892
        %v1008 = vpop.f32.mrb[0].mxu0
        %v1009 = vadd.f32 0.0, %v1008
        %v1010 = vpop.f32.mrb[0].mxu0
        %1011 = vmatprep.mubr.f32.mxu0 0.0
        %1012 = vmatmul.mubr.f32.gmra.mrb[0].mxu0 %v895
        %v1013 = vpop.f32.mrb[0].mxu0
        %v1014 = vadd.f32 0.0, %v1013
        %v1015 = vpop.f32.mrb[0].mxu0
        %1016 = vmatprep.mubr.f32.mxu0 0.0
        %1017 = vmatmul.mubr.f32.gmra.mrb[0].mxu0 %v898
        %v1018 = vpop.f32.mrb[0].mxu0
        %v1019 = vadd.f32 0.0, %v1018
        %v1020 = vpop.f32.mrb[0].mxu0
        %1021 = vmatprep.mubr.f32.mxu0 0.0
        %1022 = vmatmul.mubr.f32.gmra.mrb[0].mxu0 %v901
        %v1023 = vpop.f32.mrb[0].mxu0
        %v1024 = vadd.f32 0.0, %v1023
        %v1025 = vpop.f32.mrb[0].mxu0
        %1026 = vmatprep.mubr.f32.mxu0 0.0
        %1027 = vmatmul.mubr.f32.gmra.mrb[0].mxu0 %v904
        %v1028 = vpop.f32.mrb[0].mxu0
        %v1029 = vadd.f32 0.0, %v1028
        %v1030 = vpop.f32.mrb[0].mxu0
        %1031 = vmatprep.mubr.f32.mxu0 0.0
        %1032 = vmatmul.mubr.f32.gmra.mrb[0].mxu0 %v907
        %v1033 = vpop.f32.mrb[0].mxu0
        %v1034 = vadd.f32 0.0, %v1033
        %v1035 = vpop.f32.mrb[0].mxu0
        %1036 = vdwg.mxu0
        %1037 = vxpose.xlu0.b32.start [1/16] %v979, 128
        %1038 = vxpose.xlu0.b32.cont [2/16] 0.0, 128
        %1039 = vxpose.xlu0.b32.cont [3/16] 0.0, 128
        %1040 = vxpose.xlu0.b32.cont [4/16] 0.0, 128
        %1041 = vxpose.xlu0.b32.cont [5/16] 0.0, 128
        %1042 = vxpose.xlu0.b32.cont [6/16] 0.0, 128
        %1043 = vxpose.xlu0.b32.cont [7/16] 0.0, 128
        %1044 = vxpose.xlu0.b32.cont [8/16] 0.0, 128
        %1045 = vxpose.xlu0.b32.cont [9/16] 0.0, 128
        %1046 = vxpose.xlu0.b32.cont [10/16] 0.0, 128
        %1047 = vxpose.xlu0.b32.cont [11/16] 0.0, 128
        %1048 = vxpose.xlu0.b32.cont [12/16] 0.0, 128
        %1049 = vxpose.xlu0.b32.cont [13/16] 0.0, 128
        %1050 = vxpose.xlu0.b32.cont [14/16] 0.0, 128
        %1051 = vxpose.xlu0.b32.cont [15/16] 0.0, 128
        %1052 = vxpose.xlu0.b32.end [16/16] 0.0, 128
        %v1053 = vpop.trf.xlu0
        %v1054 = vpop.trf.xlu0
        %v1055 = vpop.trf.xlu0
        %v1056 = vpop.trf.xlu0
        %v1057 = vpop.trf.xlu0
        %v1058 = vpop.trf.xlu0
        %v1059 = vpop.trf.xlu0
        %v1060 = vpop.trf.xlu0
        %v1061 = vpop.trf.xlu0
        %v1062 = vpop.trf.xlu0
        %v1063 = vpop.trf.xlu0
        %v1064 = vpop.trf.xlu0
        %v1065 = vpop.trf.xlu0
        %v1066 = vpop.trf.xlu0
        %v1067 = vpop.trf.xlu0
        %v1068 = vpop.trf.xlu0
        %1069 = vxpose.xlu0.b32.start [1/16] %v984, 128
        %1070 = vxpose.xlu0.b32.cont [2/16] 0.0, 128
        %1071 = vxpose.xlu0.b32.cont [3/16] 0.0, 128
        %1072 = vxpose.xlu0.b32.cont [4/16] 0.0, 128
        %1073 = vxpose.xlu0.b32.cont [5/16] 0.0, 128
        %1074 = vxpose.xlu0.b32.cont [6/16] 0.0, 128
        %1075 = vxpose.xlu0.b32.cont [7/16] 0.0, 128
        %1076 = vxpose.xlu0.b32.cont [8/16] 0.0, 128
        %1077 = vxpose.xlu0.b32.cont [9/16] 0.0, 128
        %1078 = vxpose.xlu0.b32.cont [10/16] 0.0, 128
        %1079 = vxpose.xlu0.b32.cont [11/16] 0.0, 128
        %1080 = vxpose.xlu0.b32.cont [12/16] 0.0, 128
        %1081 = vxpose.xlu0.b32.cont [13/16] 0.0, 128
        %1082 = vxpose.xlu0.b32.cont [14/16] 0.0, 128
        %1083 = vxpose.xlu0.b32.cont [15/16] 0.0, 128
        %1084 = vxpose.xlu0.b32.end [16/16] 0.0, 128
        %v1085 = vpop.trf.xlu0
        %v1086 = vpop.trf.xlu0
        %v1087 = vpop.trf.xlu0
        %v1088 = vpop.trf.xlu0
        %v1089 = vpop.trf.xlu0
        %v1090 = vpop.trf.xlu0
        %v1091 = vpop.trf.xlu0
        %v1092 = vpop.trf.xlu0
        %v1093 = vpop.trf.xlu0
        %v1094 = vpop.trf.xlu0
        %v1095 = vpop.trf.xlu0
        %v1096 = vpop.trf.xlu0
        %v1097 = vpop.trf.xlu0
        %v1098 = vpop.trf.xlu0
        %v1099 = vpop.trf.xlu0
        %v1100 = vpop.trf.xlu0
        %1101 = vxpose.xlu0.b32.start [1/16] %v989, 128
        %1102 = vxpose.xlu0.b32.cont [2/16] 0.0, 128
        %1103 = vxpose.xlu0.b32.cont [3/16] 0.0, 128
        %1104 = vxpose.xlu0.b32.cont [4/16] 0.0, 128
        %1105 = vxpose.xlu0.b32.cont [5/16] 0.0, 128
        %1106 = vxpose.xlu0.b32.cont [6/16] 0.0, 128
        %1107 = vxpose.xlu0.b32.cont [7/16] 0.0, 128
        %1108 = vxpose.xlu0.b32.cont [8/16] 0.0, 128
        %1109 = vxpose.xlu0.b32.cont [9/16] 0.0, 128
        %1110 = vxpose.xlu0.b32.cont [10/16] 0.0, 128
        %1111 = vxpose.xlu0.b32.cont [11/16] 0.0, 128
        %1112 = vxpose.xlu0.b32.cont [12/16] 0.0, 128
        %1113 = vxpose.xlu0.b32.cont [13/16] 0.0, 128
        %1114 = vxpose.xlu0.b32.cont [14/16] 0.0, 128
        %1115 = vxpose.xlu0.b32.cont [15/16] 0.0, 128
        %1116 = vxpose.xlu0.b32.end [16/16] 0.0, 128
        %v1117 = vpop.trf.xlu0
        %v1118 = vpop.trf.xlu0
        %v1119 = vpop.trf.xlu0
        %v1120 = vpop.trf.xlu0
        %v1121 = vpop.trf.xlu0
        %v1122 = vpop.trf.xlu0
        %v1123 = vpop.trf.xlu0
        %v1124 = vpop.trf.xlu0
        %v1125 = vpop.trf.xlu0
        %v1126 = vpop.trf.xlu0
        %v1127 = vpop.trf.xlu0
        %v1128 = vpop.trf.xlu0
        %v1129 = vpop.trf.xlu0
        %v1130 = vpop.trf.xlu0
        %v1131 = vpop.trf.xlu0
        %v1132 = vpop.trf.xlu0
        %1133 = vxpose.xlu0.b32.start [1/16] %v994, 128
        %1134 = vxpose.xlu0.b32.cont [2/16] 0.0, 128
        %1135 = vxpose.xlu0.b32.cont [3/16] 0.0, 128
        %1136 = vxpose.xlu0.b32.cont [4/16] 0.0, 128
        %1137 = vxpose.xlu0.b32.cont [5/16] 0.0, 128
        %1138 = vxpose.xlu0.b32.cont [6/16] 0.0, 128
        %1139 = vxpose.xlu0.b32.cont [7/16] 0.0, 128
        %1140 = vxpose.xlu0.b32.cont [8/16] 0.0, 128
        %1141 = vxpose.xlu0.b32.cont [9/16] 0.0, 128
        %1142 = vxpose.xlu0.b32.cont [10/16] 0.0, 128
        %1143 = vxpose.xlu0.b32.cont [11/16] 0.0, 128
        %1144 = vxpose.xlu0.b32.cont [12/16] 0.0, 128
        %1145 = vxpose.xlu0.b32.cont [13/16] 0.0, 128
        %1146 = vxpose.xlu0.b32.cont [14/16] 0.0, 128
        %1147 = vxpose.xlu0.b32.cont [15/16] 0.0, 128
        %1148 = vxpose.xlu0.b32.end [16/16] 0.0, 128
        %v1149 = vpop.trf.xlu0
        %v1150 = vpop.trf.xlu0
        %v1151 = vpop.trf.xlu0
        %v1152 = vpop.trf.xlu0
        %v1153 = vpop.trf.xlu0
        %v1154 = vpop.trf.xlu0
        %v1155 = vpop.trf.xlu0
        %v1156 = vpop.trf.xlu0
        %v1157 = vpop.trf.xlu0
        %v1158 = vpop.trf.xlu0
        %v1159 = vpop.trf.xlu0
        %v1160 = vpop.trf.xlu0
        %v1161 = vpop.trf.xlu0
        %v1162 = vpop.trf.xlu0
        %v1163 = vpop.trf.xlu0
        %v1164 = vpop.trf.xlu0
        %v1166 = vsel %vm648, %v1053, 0
        %1168 = vmatprep.subr.mxu0 0.0
        %1169 = vmatpush1.msra.mxu0 %v999
        %1170 = vmatprep.subr.mxu0 0.0
        %1171 = vmatpush1.msra.mxu0 0.0
        %1172 = vmatprep.subr.mxu0 0.0
        %1173 = vmatpush1.msra.mxu0 0.0
        %1174 = vmatprep.subr.mxu0 0.0
        %1175 = vmatpush1.msra.mxu0 0.0
        %1176 = vmatprep.subr.mxu0 0.0
        %1177 = vmatpush1.msra.mxu0 0.0
        %1178 = vmatprep.subr.mxu0 0.0
        %1179 = vmatpush1.msra.mxu0 0.0
        %1180 = vmatprep.subr.mxu0 0.0
        %1181 = vmatpush1.msra.mxu0 0.0
        %1182 = vmatprep.subr.mxu0 0.0
        %1183 = vmatpush1.msra.mxu0 0.0
        %1184 = vmatprep.subr.mxu0 0.0
        %1185 = vmatpush1.msra.mxu0 0.0
        %1186 = vmatprep.subr.mxu0 0.0
        %1187 = vmatpush1.msra.mxu0 0.0
        %1188 = vmatprep.subr.mxu0 0.0
        %1189 = vmatpush1.msra.mxu0 0.0
        %1190 = vmatprep.subr.mxu0 0.0
        %1191 = vmatpush1.msra.mxu0 0.0
        %1192 = vmatprep.subr.mxu0 0.0
        %1193 = vmatpush1.msra.mxu0 0.0
        %1194 = vmatprep.subr.mxu0 0.0
        %1195 = vmatpush1.msra.mxu0 0.0
        %1196 = vmatprep.subr.mxu0 0.0
        %1197 = vmatpush1.msra.mxu0 0.0
        %1198 = vmatprep.subr.mxu0 0.0
        %1199 = vmatpush1.msra.mxu0 0.0
        %1200 = vmatprep.subr.mxu0 0.0
        %1201 = vmatpush1.msra.mxu0 0.0
        %1202 = vmatprep.subr.mxu0 0.0
        %1203 = vmatpush1.msra.mxu0 0.0
        %1204 = vmatprep.subr.mxu0 0.0
        %1205 = vmatpush1.msra.mxu0 0.0
        %1206 = vmatprep.subr.mxu0 0.0
        %1207 = vmatpush1.msra.mxu0 0.0
        %1208 = vmatprep.subr.mxu0 0.0
        %1209 = vmatpush1.msra.mxu0 0.0
        %1210 = vmatprep.subr.mxu0 0.0
        %1211 = vmatpush1.msra.mxu0 0.0
        %1212 = vmatprep.subr.mxu0 0.0
        %1213 = vmatpush1.msra.mxu0 0.0
        %1214 = vmatprep.subr.mxu0 0.0
        %1215 = vmatpush1.msra.mxu0 0.0
        %1216 = vmatprep.subr.mxu0 0.0
        %1217 = vmatpush1.msra.mxu0 0.0
        %1218 = vmatprep.subr.mxu0 0.0
        %1219 = vmatpush1.msra.mxu0 0.0
        %1220 = vmatprep.subr.mxu0 0.0
        %1221 = vmatpush1.msra.mxu0 0.0
        %1222 = vmatprep.subr.mxu0 0.0
        %1223 = vmatpush1.msra.mxu0 0.0
        %1224 = vmatprep.subr.mxu0 0.0
        %1225 = vmatpush1.msra.mxu0 0.0
        %1226 = vmatprep.subr.mxu0 0.0
        %1227 = vmatpush1.msra.mxu0 0.0
        %1228 = vmatprep.subr.mxu0 0.0
        %1229 = vmatpush1.msra.mxu0 0.0
        %1230 = vmatprep.subr.mxu0 0.0
        %1231 = vmatpush1.msra.mxu0 0.0
        %1232 = vmatprep.mubr.f32.mxu0 0.0
        %1233 = vmatmul.mubr.f32.gmra.mrb[0].mxu0 %v1166
        %v1234 = vpop.f32.mrb[0].mxu0
        %v1235 = vadd.f32 0.0, %v1234
        %v1236 = vpop.f32.mrb[0].mxu0
        %1237 = vdwg.mxu0
        %v1239 = vsel %vm648, %v1085, 0
        %1241 = vmatprep.subr.mxu0 0.0
        %1242 = vmatpush1.msra.mxu0 %v1004
        %1243 = vmatprep.subr.mxu0 0.0
        %1244 = vmatpush1.msra.mxu0 0.0
        %1245 = vmatprep.subr.mxu0 0.0
        %1246 = vmatpush1.msra.mxu0 0.0
        %1247 = vmatprep.subr.mxu0 0.0
        %1248 = vmatpush1.msra.mxu0 0.0
        %1249 = vmatprep.subr.mxu0 0.0
        %1250 = vmatpush1.msra.mxu0 0.0
        %1251 = vmatprep.subr.mxu0 0.0
        %1252 = vmatpush1.msra.mxu0 0.0
        %1253 = vmatprep.subr.mxu0 0.0
        %1254 = vmatpush1.msra.mxu0 0.0
        %1255 = vmatprep.subr.mxu0 0.0
        %1256 = vmatpush1.msra.mxu0 0.0
        %1257 = vmatprep.subr.mxu0 0.0
        %1258 = vmatpush1.msra.mxu0 0.0
        %1259 = vmatprep.subr.mxu0 0.0
        %1260 = vmatpush1.msra.mxu0 0.0
        %1261 = vmatprep.subr.mxu0 0.0
        %1262 = vmatpush1.msra.mxu0 0.0
        %1263 = vmatprep.subr.mxu0 0.0
        %1264 = vmatpush1.msra.mxu0 0.0
        %1265 = vmatprep.subr.mxu0 0.0
        %1266 = vmatpush1.msra.mxu0 0.0
        %1267 = vmatprep.subr.mxu0 0.0
        %1268 = vmatpush1.msra.mxu0 0.0
        %1269 = vmatprep.subr.mxu0 0.0
        %1270 = vmatpush1.msra.mxu0 0.0
        %1271 = vmatprep.subr.mxu0 0.0
        %1272 = vmatpush1.msra.mxu0 0.0
        %1273 = vmatprep.subr.mxu0 0.0
        %1274 = vmatpush1.msra.mxu0 0.0
        %1275 = vmatprep.subr.mxu0 0.0
        %1276 = vmatpush1.msra.mxu0 0.0
        %1277 = vmatprep.subr.mxu0 0.0
        %1278 = vmatpush1.msra.mxu0 0.0
        %1279 = vmatprep.subr.mxu0 0.0
        %1280 = vmatpush1.msra.mxu0 0.0
        %1281 = vmatprep.subr.mxu0 0.0
        %1282 = vmatpush1.msra.mxu0 0.0
        %1283 = vmatprep.subr.mxu0 0.0
        %1284 = vmatpush1.msra.mxu0 0.0
        %1285 = vmatprep.subr.mxu0 0.0
        %1286 = vmatpush1.msra.mxu0 0.0
        %1287 = vmatprep.subr.mxu0 0.0
        %1288 = vmatpush1.msra.mxu0 0.0
        %1289 = vmatprep.subr.mxu0 0.0
        %1290 = vmatpush1.msra.mxu0 0.0
        %1291 = vmatprep.subr.mxu0 0.0
        %1292 = vmatpush1.msra.mxu0 0.0
        %1293 = vmatprep.subr.mxu0 0.0
        %1294 = vmatpush1.msra.mxu0 0.0
        %1295 = vmatprep.subr.mxu0 0.0
        %1296 = vmatpush1.msra.mxu0 0.0
        %1297 = vmatprep.subr.mxu0 0.0
        %1298 = vmatpush1.msra.mxu0 0.0
        %1299 = vmatprep.subr.mxu0 0.0
        %1300 = vmatpush1.msra.mxu0 0.0
        %1301 = vmatprep.subr.mxu0 0.0
        %1302 = vmatpush1.msra.mxu0 0.0
        %1303 = vmatprep.subr.mxu0 0.0
        %1304 = vmatpush1.msra.mxu0 0.0
        %1305 = vmatprep.mubr.f32.mxu0 0.0
        %1306 = vmatmul.mubr.f32.gmra.mrb[0].mxu0 %v1239
        %v1307 = vpop.f32.mrb[0].mxu0
        %v1308 = vadd.f32 0.0, %v1307
        %v1309 = vpop.f32.mrb[0].mxu0
        %1310 = vdwg.mxu0
        %v1312 = vsel %vm648, %v1117, 0
        %1314 = vmatprep.subr.mxu0 0.0
        %1315 = vmatpush1.msra.mxu0 %v1009
        %1316 = vmatprep.subr.mxu0 0.0
        %1317 = vmatpush1.msra.mxu0 0.0
        %1318 = vmatprep.subr.mxu0 0.0
        %1319 = vmatpush1.msra.mxu0 0.0
        %1320 = vmatprep.subr.mxu0 0.0
        %1321 = vmatpush1.msra.mxu0 0.0
        %1322 = vmatprep.subr.mxu0 0.0
        %1323 = vmatpush1.msra.mxu0 0.0
        %1324 = vmatprep.subr.mxu0 0.0
        %1325 = vmatpush1.msra.mxu0 0.0
        %1326 = vmatprep.subr.mxu0 0.0
        %1327 = vmatpush1.msra.mxu0 0.0
        %1328 = vmatprep.subr.mxu0 0.0
        %1329 = vmatpush1.msra.mxu0 0.0
        %1330 = vmatprep.subr.mxu0 0.0
        %1331 = vmatpush1.msra.mxu0 0.0
        %1332 = vmatprep.subr.mxu0 0.0
        %1333 = vmatpush1.msra.mxu0 0.0
        %1334 = vmatprep.subr.mxu0 0.0
        %1335 = vmatpush1.msra.mxu0 0.0
        %1336 = vmatprep.subr.mxu0 0.0
        %1337 = vmatpush1.msra.mxu0 0.0
        %1338 = vmatprep.subr.mxu0 0.0
        %1339 = vmatpush1.msra.mxu0 0.0
        %1340 = vmatprep.subr.mxu0 0.0
        %1341 = vmatpush1.msra.mxu0 0.0
        %1342 = vmatprep.subr.mxu0 0.0
        %1343 = vmatpush1.msra.mxu0 0.0
        %1344 = vmatprep.subr.mxu0 0.0
        %1345 = vmatpush1.msra.mxu0 0.0
        %1346 = vmatprep.subr.mxu0 0.0
        %1347 = vmatpush1.msra.mxu0 0.0
        %1348 = vmatprep.subr.mxu0 0.0
        %1349 = vmatpush1.msra.mxu0 0.0
        %1350 = vmatprep.subr.mxu0 0.0
        %1351 = vmatpush1.msra.mxu0 0.0
        %1352 = vmatprep.subr.mxu0 0.0
        %1353 = vmatpush1.msra.mxu0 0.0
        %1354 = vmatprep.subr.mxu0 0.0
        %1355 = vmatpush1.msra.mxu0 0.0
        %1356 = vmatprep.subr.mxu0 0.0
        %1357 = vmatpush1.msra.mxu0 0.0
        %1358 = vmatprep.subr.mxu0 0.0
        %1359 = vmatpush1.msra.mxu0 0.0
        %1360 = vmatprep.subr.mxu0 0.0
        %1361 = vmatpush1.msra.mxu0 0.0
        %1362 = vmatprep.subr.mxu0 0.0
        %1363 = vmatpush1.msra.mxu0 0.0
        %1364 = vmatprep.subr.mxu0 0.0
        %1365 = vmatpush1.msra.mxu0 0.0
        %1366 = vmatprep.subr.mxu0 0.0
        %1367 = vmatpush1.msra.mxu0 0.0
        %1368 = vmatprep.subr.mxu0 0.0
        %1369 = vmatpush1.msra.mxu0 0.0
        %1370 = vmatprep.subr.mxu0 0.0
        %1371 = vmatpush1.msra.mxu0 0.0
        %1372 = vmatprep.subr.mxu0 0.0
        %1373 = vmatpush1.msra.mxu0 0.0
        %1374 = vmatprep.subr.mxu0 0.0
        %1375 = vmatpush1.msra.mxu0 0.0
        %1376 = vmatprep.subr.mxu0 0.0
        %1377 = vmatpush1.msra.mxu0 0.0
        %1378 = vmatprep.mubr.f32.mxu0 0.0
        %1379 = vmatmul.mubr.f32.gmra.mrb[0].mxu0 %v1312
        %v1380 = vpop.f32.mrb[0].mxu0
        %v1381 = vadd.f32 0.0, %v1380
        %v1382 = vpop.f32.mrb[0].mxu0
        %1383 = vdwg.mxu0
        %v1385 = vsel %vm648, %v1149, 0
        %1387 = vmatprep.subr.mxu0 0.0
        %1388 = vmatpush1.msra.mxu0 %v1014
        %1389 = vmatprep.subr.mxu0 0.0
        %1390 = vmatpush1.msra.mxu0 0.0
        %1391 = vmatprep.subr.mxu0 0.0
        %1392 = vmatpush1.msra.mxu0 0.0
        %1393 = vmatprep.subr.mxu0 0.0
        %1394 = vmatpush1.msra.mxu0 0.0
        %1395 = vmatprep.subr.mxu0 0.0
        %1396 = vmatpush1.msra.mxu0 0.0
        %1397 = vmatprep.subr.mxu0 0.0
        %1398 = vmatpush1.msra.mxu0 0.0
        %1399 = vmatprep.subr.mxu0 0.0
        %1400 = vmatpush1.msra.mxu0 0.0
        %1401 = vmatprep.subr.mxu0 0.0
        %1402 = vmatpush1.msra.mxu0 0.0
        %1403 = vmatprep.subr.mxu0 0.0
        %1404 = vmatpush1.msra.mxu0 0.0
        %1405 = vmatprep.subr.mxu0 0.0
        %1406 = vmatpush1.msra.mxu0 0.0
        %1407 = vmatprep.subr.mxu0 0.0
        %1408 = vmatpush1.msra.mxu0 0.0
        %1409 = vmatprep.subr.mxu0 0.0
        %1410 = vmatpush1.msra.mxu0 0.0
        %1411 = vmatprep.subr.mxu0 0.0
        %1412 = vmatpush1.msra.mxu0 0.0
        %1413 = vmatprep.subr.mxu0 0.0
        %1414 = vmatpush1.msra.mxu0 0.0
        %1415 = vmatprep.subr.mxu0 0.0
        %1416 = vmatpush1.msra.mxu0 0.0
        %1417 = vmatprep.subr.mxu0 0.0
        %1418 = vmatpush1.msra.mxu0 0.0
        %1419 = vmatprep.subr.mxu0 0.0
        %1420 = vmatpush1.msra.mxu0 0.0
        %1421 = vmatprep.subr.mxu0 0.0
        %1422 = vmatpush1.msra.mxu0 0.0
        %1423 = vmatprep.subr.mxu0 0.0
        %1424 = vmatpush1.msra.mxu0 0.0
        %1425 = vmatprep.subr.mxu0 0.0
        %1426 = vmatpush1.msra.mxu0 0.0
        %1427 = vmatprep.subr.mxu0 0.0
        %1428 = vmatpush1.msra.mxu0 0.0
        %1429 = vmatprep.subr.mxu0 0.0
        %1430 = vmatpush1.msra.mxu0 0.0
        %1431 = vmatprep.subr.mxu0 0.0
        %1432 = vmatpush1.msra.mxu0 0.0
        %1433 = vmatprep.subr.mxu0 0.0
        %1434 = vmatpush1.msra.mxu0 0.0
        %1435 = vmatprep.subr.mxu0 0.0
        %1436 = vmatpush1.msra.mxu0 0.0
        %1437 = vmatprep.subr.mxu0 0.0
        %1438 = vmatpush1.msra.mxu0 0.0
        %1439 = vmatprep.subr.mxu0 0.0
        %1440 = vmatpush1.msra.mxu0 0.0
        %1441 = vmatprep.subr.mxu0 0.0
        %1442 = vmatpush1.msra.mxu0 0.0
        %1443 = vmatprep.subr.mxu0 0.0
        %1444 = vmatpush1.msra.mxu0 0.0
        %1445 = vmatprep.subr.mxu0 0.0
        %1446 = vmatpush1.msra.mxu0 0.0
        %1447 = vmatprep.subr.mxu0 0.0
        %1448 = vmatpush1.msra.mxu0 0.0
        %1449 = vmatprep.subr.mxu0 0.0
        %1450 = vmatpush1.msra.mxu0 0.0
        %1451 = vmatprep.mubr.f32.mxu0 0.0
        %1452 = vmatmul.mubr.f32.gmra.mrb[0].mxu0 %v1385
        %v1453 = vpop.f32.mrb[0].mxu0
        %v1454 = vadd.f32 0.0, %v1453
        %v1455 = vpop.f32.mrb[0].mxu0
        %1456 = vdwg.mxu0
        %v1457 = vsel %vm648, %v1235, -inf
        %1458 = vmax.xlane.f32.xlu0 %v1457
        %v1459 = vpop.xlane.xlu0 %1458
        %v1460 = vsel %vm648, %v1308, -inf
        %1461 = vmax.xlane.f32.xlu0 %v1460
        %v1462 = vpop.xlane.xlu0 %1461
        %v1463 = vsel %vm648, %v1381, -inf
        %1464 = vmax.xlane.f32.xlu0 %v1463
        %v1465 = vpop.xlane.xlu0 %1464
        %v1466 = vsel %vm648, %v1454, -inf
        %1467 = vmax.xlane.f32.xlu0 %v1466
        %v1468 = vpop.xlane.xlu0 %1467
        %v1469 = vsub.f32 %v1235, %v1459
        %v1470 = vsub.f32 %v1308, %v1462
        %v1471 = vsub.f32 %v1381, %v1465
        %v1472 = vsub.f32 %v1454, %v1468
        %v1473 = vmul.f32 %v1469, 1.442695
        %v1474 = vpow.pop %v1473
        %v1475 = vmul.f32 %v1470, 1.442695
        %v1476 = vpow.pop %v1475
        %v1477 = vmul.f32 %v1471, 1.442695
        %v1478 = vpow.pop %v1477
        %v1479 = vmul.f32 %v1472, 1.442695
        %v1480 = vpow.pop %v1479
        %v1481 = vsel %vm648, %v1474, 0.0
        %1482 = vadd.xlane.f32.xlu0 %v1481
        %v1483 = vpop.xlane.xlu0 %1482
        %v1484 = vsel %vm648, %v1476, 0.0
        %1485 = vadd.xlane.f32.xlu0 %v1484
        %v1486 = vpop.xlane.xlu0 %1485
        %v1487 = vsel %vm648, %v1478, 0.0
        %1488 = vadd.xlane.f32.xlu0 %v1487
        %v1489 = vpop.xlane.xlu0 %1488
        %v1490 = vsel %vm648, %v1480, 0.0
        %1491 = vadd.xlane.f32.xlu0 %v1490
        %v1492 = vpop.xlane.xlu0 %1491
        %v1493 = vrcp.pop %v1483
        %v1494 = vrcp.pop %v1486
        %v1495 = vrcp.pop %v1489
        %v1496 = vrcp.pop %v1492
        %v1497 = vmul.f32 %v1483, %v1493
        %v1498 = vmul.f32 %v1486, %v1494
        %v1499 = vmul.f32 %v1489, %v1495
        %v1500 = vmul.f32 %v1492, %v1496
        %v1501 = vsub.f32 2.0, %v1497
        %v1502 = vsub.f32 2.0, %v1498
        %v1503 = vsub.f32 2.0, %v1499
        %v1504 = vsub.f32 2.0, %v1500
        %v1505 = vmul.f32 %v1493, %v1501
        %v1506 = vmul.f32 %v1494, %v1502
        %v1507 = vmul.f32 %v1495, %v1503
        %v1508 = vmul.f32 %v1496, %v1504
        %v1509 = vmul.f32 %v1474, %v1505
        %v1510 = vmul.f32 %v1476, %v1506
        %v1511 = vmul.f32 %v1478, %v1507
        %v1512 = vmul.f32 %v1480, %v1508
        %v1514 = vsel %vm648, %v1509, 0
        %v1517 = vsel %vm648, %v1019, 0
        %1519 = vmatprep.subr.mxu0 0.0
        %1520 = vmatpush1.xpose.msra.mxu0 %v1517
        %1521 = vmatprep.subr.mxu0 0.0
        %1522 = vmatpush1.xpose.msra.mxu0 0.0
        %1523 = vmatprep.subr.mxu0 0.0
        %1524 = vmatpush1.xpose.msra.mxu0 0.0
        %1525 = vmatprep.subr.mxu0 0.0
        %1526 = vmatpush1.xpose.msra.mxu0 0.0
        %1527 = vmatprep.subr.mxu0 0.0
        %1528 = vmatpush1.xpose.msra.mxu0 0.0
        %1529 = vmatprep.subr.mxu0 0.0
        %1530 = vmatpush1.xpose.msra.mxu0 0.0
        %1531 = vmatprep.subr.mxu0 0.0
        %1532 = vmatpush1.xpose.msra.mxu0 0.0
        %1533 = vmatprep.subr.mxu0 0.0
        %1534 = vmatpush1.xpose.msra.mxu0 0.0
        %1535 = vmatprep.subr.mxu0 0.0
        %1536 = vmatpush1.xpose.msra.mxu0 0.0
        %1537 = vmatprep.subr.mxu0 0.0
        %1538 = vmatpush1.xpose.msra.mxu0 0.0
        %1539 = vmatprep.subr.mxu0 0.0
        %1540 = vmatpush1.xpose.msra.mxu0 0.0
        %1541 = vmatprep.subr.mxu0 0.0
        %1542 = vmatpush1.xpose.msra.mxu0 0.0
        %1543 = vmatprep.subr.mxu0 0.0
        %1544 = vmatpush1.xpose.msra.mxu0 0.0
        %1545 = vmatprep.subr.mxu0 0.0
        %1546 = vmatpush1.xpose.msra.mxu0 0.0
        %1547 = vmatprep.subr.mxu0 0.0
        %1548 = vmatpush1.xpose.msra.mxu0 0.0
        %1549 = vmatprep.subr.mxu0 0.0
        %1550 = vmatpush1.xpose.msra.mxu0 0.0
        %1551 = vmatprep.subr.mxu0 0.0
        %1552 = vmatpush1.xpose.msra.mxu0 0.0
        %1553 = vmatprep.subr.mxu0 0.0
        %1554 = vmatpush1.xpose.msra.mxu0 0.0
        %1555 = vmatprep.subr.mxu0 0.0
        %1556 = vmatpush1.xpose.msra.mxu0 0.0
        %1557 = vmatprep.subr.mxu0 0.0
        %1558 = vmatpush1.xpose.msra.mxu0 0.0
        %1559 = vmatprep.subr.mxu0 0.0
        %1560 = vmatpush1.xpose.msra.mxu0 0.0
        %1561 = vmatprep.subr.mxu0 0.0
        %1562 = vmatpush1.xpose.msra.mxu0 0.0
        %1563 = vmatprep.subr.mxu0 0.0
        %1564 = vmatpush1.xpose.msra.mxu0 0.0
        %1565 = vmatprep.subr.mxu0 0.0
        %1566 = vmatpush1.xpose.msra.mxu0 0.0
        %1567 = vmatprep.subr.mxu0 0.0
        %1568 = vmatpush1.xpose.msra.mxu0 0.0
        %1569 = vmatprep.subr.mxu0 0.0
        %1570 = vmatpush1.xpose.msra.mxu0 0.0
        %1571 = vmatprep.subr.mxu0 0.0
        %1572 = vmatpush1.xpose.msra.mxu0 0.0
        %1573 = vmatprep.subr.mxu0 0.0
        %1574 = vmatpush1.xpose.msra.mxu0 0.0
        %1575 = vmatprep.subr.mxu0 0.0
        %1576 = vmatpush1.xpose.msra.mxu0 0.0
        %1577 = vmatprep.subr.mxu0 0.0
        %1578 = vmatpush1.xpose.msra.mxu0 0.0
        %1579 = vmatprep.subr.mxu0 0.0
        %1580 = vmatpush1.xpose.msra.mxu0 0.0
        %1581 = vmatprep.subr.mxu0 0.0
        %1582 = vmatpush1.xpose.msra.mxu0 0.0
        %1583 = vmatprep.mubr.f32.mxu0 0.0
        %1584 = vmatmul.mubr.f32.gmra.mrb[0].mxu0 %v1514
        %v1585 = vpop.f32.mrb[0].mxu0
        %v1586 = vadd.f32 0.0, %v1585
        %v1587 = vpop.f32.mrb[0].mxu0
        %1588 = vdwg.mxu0
        %v1590 = vsel %vm648, %v1510, 0
        %v1593 = vsel %vm648, %v1024, 0
        %1595 = vmatprep.subr.mxu0 0.0
        %1596 = vmatpush1.xpose.msra.mxu0 %v1593
        %1597 = vmatprep.subr.mxu0 0.0
        %1598 = vmatpush1.xpose.msra.mxu0 0.0
        %1599 = vmatprep.subr.mxu0 0.0
        %1600 = vmatpush1.xpose.msra.mxu0 0.0
        %1601 = vmatprep.subr.mxu0 0.0
        %1602 = vmatpush1.xpose.msra.mxu0 0.0
        %1603 = vmatprep.subr.mxu0 0.0
        %1604 = vmatpush1.xpose.msra.mxu0 0.0
        %1605 = vmatprep.subr.mxu0 0.0
        %1606 = vmatpush1.xpose.msra.mxu0 0.0
        %1607 = vmatprep.subr.mxu0 0.0
        %1608 = vmatpush1.xpose.msra.mxu0 0.0
        %1609 = vmatprep.subr.mxu0 0.0
        %1610 = vmatpush1.xpose.msra.mxu0 0.0
        %1611 = vmatprep.subr.mxu0 0.0
        %1612 = vmatpush1.xpose.msra.mxu0 0.0
        %1613 = vmatprep.subr.mxu0 0.0
        %1614 = vmatpush1.xpose.msra.mxu0 0.0
        %1615 = vmatprep.subr.mxu0 0.0
        %1616 = vmatpush1.xpose.msra.mxu0 0.0
        %1617 = vmatprep.subr.mxu0 0.0
        %1618 = vmatpush1.xpose.msra.mxu0 0.0
        %1619 = vmatprep.subr.mxu0 0.0
        %1620 = vmatpush1.xpose.msra.mxu0 0.0
        %1621 = vmatprep.subr.mxu0 0.0
        %1622 = vmatpush1.xpose.msra.mxu0 0.0
        %1623 = vmatprep.subr.mxu0 0.0
        %1624 = vmatpush1.xpose.msra.mxu0 0.0
        %1625 = vmatprep.subr.mxu0 0.0
        %1626 = vmatpush1.xpose.msra.mxu0 0.0
        %1627 = vmatprep.subr.mxu0 0.0
        %1628 = vmatpush1.xpose.msra.mxu0 0.0
        %1629 = vmatprep.subr.mxu0 0.0
        %1630 = vmatpush1.xpose.msra.mxu0 0.0
        %1631 = vmatprep.subr.mxu0 0.0
        %1632 = vmatpush1.xpose.msra.mxu0 0.0
        %1633 = vmatprep.subr.mxu0 0.0
        %1634 = vmatpush1.xpose.msra.mxu0 0.0
        %1635 = vmatprep.subr.mxu0 0.0
        %1636 = vmatpush1.xpose.msra.mxu0 0.0
        %1637 = vmatprep.subr.mxu0 0.0
        %1638 = vmatpush1.xpose.msra.mxu0 0.0
        %1639 = vmatprep.subr.mxu0 0.0
        %1640 = vmatpush1.xpose.msra.mxu0 0.0
        %1641 = vmatprep.subr.mxu0 0.0
        %1642 = vmatpush1.xpose.msra.mxu0 0.0
        %1643 = vmatprep.subr.mxu0 0.0
        %1644 = vmatpush1.xpose.msra.mxu0 0.0
        %1645 = vmatprep.subr.mxu0 0.0
        %1646 = vmatpush1.xpose.msra.mxu0 0.0
        %1647 = vmatprep.subr.mxu0 0.0
        %1648 = vmatpush1.xpose.msra.mxu0 0.0
        %1649 = vmatprep.subr.mxu0 0.0
        %1650 = vmatpush1.xpose.msra.mxu0 0.0
        %1651 = vmatprep.subr.mxu0 0.0
        %1652 = vmatpush1.xpose.msra.mxu0 0.0
        %1653 = vmatprep.subr.mxu0 0.0
        %1654 = vmatpush1.xpose.msra.mxu0 0.0
        %1655 = vmatprep.subr.mxu0 0.0
        %1656 = vmatpush1.xpose.msra.mxu0 0.0
        %1657 = vmatprep.subr.mxu0 0.0
        %1658 = vmatpush1.xpose.msra.mxu0 0.0
        %1659 = vmatprep.mubr.f32.mxu0 0.0
        %1660 = vmatmul.mubr.f32.gmra.mrb[0].mxu0 %v1590
        %v1661 = vpop.f32.mrb[0].mxu0
        %v1662 = vadd.f32 0.0, %v1661
        %v1663 = vpop.f32.mrb[0].mxu0
        %1664 = vdwg.mxu0
        %v1666 = vsel %vm648, %v1511, 0
        %v1669 = vsel %vm648, %v1029, 0
        %1671 = vmatprep.subr.mxu0 0.0
        %1672 = vmatpush1.xpose.msra.mxu0 %v1669
        %1673 = vmatprep.subr.mxu0 0.0
        %1674 = vmatpush1.xpose.msra.mxu0 0.0
        %1675 = vmatprep.subr.mxu0 0.0
        %1676 = vmatpush1.xpose.msra.mxu0 0.0
        %1677 = vmatprep.subr.mxu0 0.0
        %1678 = vmatpush1.xpose.msra.mxu0 0.0
        %1679 = vmatprep.subr.mxu0 0.0
        %1680 = vmatpush1.xpose.msra.mxu0 0.0
        %1681 = vmatprep.subr.mxu0 0.0
        %1682 = vmatpush1.xpose.msra.mxu0 0.0
        %1683 = vmatprep.subr.mxu0 0.0
        %1684 = vmatpush1.xpose.msra.mxu0 0.0
        %1685 = vmatprep.subr.mxu0 0.0
        %1686 = vmatpush1.xpose.msra.mxu0 0.0
        %1687 = vmatprep.subr.mxu0 0.0
        %1688 = vmatpush1.xpose.msra.mxu0 0.0
        %1689 = vmatprep.subr.mxu0 0.0
        %1690 = vmatpush1.xpose.msra.mxu0 0.0
        %1691 = vmatprep.subr.mxu0 0.0
        %1692 = vmatpush1.xpose.msra.mxu0 0.0
        %1693 = vmatprep.subr.mxu0 0.0
        %1694 = vmatpush1.xpose.msra.mxu0 0.0
        %1695 = vmatprep.subr.mxu0 0.0
        %1696 = vmatpush1.xpose.msra.mxu0 0.0
        %1697 = vmatprep.subr.mxu0 0.0
        %1698 = vmatpush1.xpose.msra.mxu0 0.0
        %1699 = vmatprep.subr.mxu0 0.0
        %1700 = vmatpush1.xpose.msra.mxu0 0.0
        %1701 = vmatprep.subr.mxu0 0.0
        %1702 = vmatpush1.xpose.msra.mxu0 0.0
        %1703 = vmatprep.subr.mxu0 0.0
        %1704 = vmatpush1.xpose.msra.mxu0 0.0
        %1705 = vmatprep.subr.mxu0 0.0
        %1706 = vmatpush1.xpose.msra.mxu0 0.0
        %1707 = vmatprep.subr.mxu0 0.0
        %1708 = vmatpush1.xpose.msra.mxu0 0.0
        %1709 = vmatprep.subr.mxu0 0.0
        %1710 = vmatpush1.xpose.msra.mxu0 0.0
        %1711 = vmatprep.subr.mxu0 0.0
        %1712 = vmatpush1.xpose.msra.mxu0 0.0
        %1713 = vmatprep.subr.mxu0 0.0
        %1714 = vmatpush1.xpose.msra.mxu0 0.0
        %1715 = vmatprep.subr.mxu0 0.0
        %1716 = vmatpush1.xpose.msra.mxu0 0.0
        %1717 = vmatprep.subr.mxu0 0.0
        %1718 = vmatpush1.xpose.msra.mxu0 0.0
        %1719 = vmatprep.subr.mxu0 0.0
        %1720 = vmatpush1.xpose.msra.mxu0 0.0
        %1721 = vmatprep.subr.mxu0 0.0
        %1722 = vmatpush1.xpose.msra.mxu0 0.0
        %1723 = vmatprep.subr.mxu0 0.0
        %1724 = vmatpush1.xpose.msra.mxu0 0.0
        %1725 = vmatprep.subr.mxu0 0.0
        %1726 = vmatpush1.xpose.msra.mxu0 0.0
        %1727 = vmatprep.subr.mxu0 0.0
        %1728 = vmatpush1.xpose.msra.mxu0 0.0
        %1729 = vmatprep.subr.mxu0 0.0
        %1730 = vmatpush1.xpose.msra.mxu0 0.0
        %1731 = vmatprep.subr.mxu0 0.0
        %1732 = vmatpush1.xpose.msra.mxu0 0.0
        %1733 = vmatprep.subr.mxu0 0.0
        %1734 = vmatpush1.xpose.msra.mxu0 0.0
        %1735 = vmatprep.mubr.f32.mxu0 0.0
        %1736 = vmatmul.mubr.f32.gmra.mrb[0].mxu0 %v1666
        %v1737 = vpop.f32.mrb[0].mxu0
        %v1738 = vadd.f32 0.0, %v1737
        %v1739 = vpop.f32.mrb[0].mxu0
        %1740 = vdwg.mxu0
        %v1742 = vsel %vm648, %v1512, 0
        %v1745 = vsel %vm648, %v1034, 0
        %1747 = vmatprep.subr.mxu0 0.0
        %1748 = vmatpush1.xpose.msra.mxu0 %v1745
        %1749 = vmatprep.subr.mxu0 0.0
        %1750 = vmatpush1.xpose.msra.mxu0 0.0
        %1751 = vmatprep.subr.mxu0 0.0
        %1752 = vmatpush1.xpose.msra.mxu0 0.0
        %1753 = vmatprep.subr.mxu0 0.0
        %1754 = vmatpush1.xpose.msra.mxu0 0.0
        %1755 = vmatprep.subr.mxu0 0.0
        %1756 = vmatpush1.xpose.msra.mxu0 0.0
        %1757 = vmatprep.subr.mxu0 0.0
        %1758 = vmatpush1.xpose.msra.mxu0 0.0
        %1759 = vmatprep.subr.mxu0 0.0
        %1760 = vmatpush1.xpose.msra.mxu0 0.0
        %1761 = vmatprep.subr.mxu0 0.0
        %1762 = vmatpush1.xpose.msra.mxu0 0.0
        %1763 = vmatprep.subr.mxu0 0.0
        %1764 = vmatpush1.xpose.msra.mxu0 0.0
        %1765 = vmatprep.subr.mxu0 0.0
        %1766 = vmatpush1.xpose.msra.mxu0 0.0
        %1767 = vmatprep.subr.mxu0 0.0
        %1768 = vmatpush1.xpose.msra.mxu0 0.0
        %1769 = vmatprep.subr.mxu0 0.0
        %1770 = vmatpush1.xpose.msra.mxu0 0.0
        %1771 = vmatprep.subr.mxu0 0.0
        %1772 = vmatpush1.xpose.msra.mxu0 0.0
        %1773 = vmatprep.subr.mxu0 0.0
        %1774 = vmatpush1.xpose.msra.mxu0 0.0
        %1775 = vmatprep.subr.mxu0 0.0
        %1776 = vmatpush1.xpose.msra.mxu0 0.0
        %1777 = vmatprep.subr.mxu0 0.0
        %1778 = vmatpush1.xpose.msra.mxu0 0.0
        %1779 = vmatprep.subr.mxu0 0.0
        %1780 = vmatpush1.xpose.msra.mxu0 0.0
        %1781 = vmatprep.subr.mxu0 0.0
        %1782 = vmatpush1.xpose.msra.mxu0 0.0
        %1783 = vmatprep.subr.mxu0 0.0
        %1784 = vmatpush1.xpose.msra.mxu0 0.0
        %1785 = vmatprep.subr.mxu0 0.0
        %1786 = vmatpush1.xpose.msra.mxu0 0.0
        %1787 = vmatprep.subr.mxu0 0.0
        %1788 = vmatpush1.xpose.msra.mxu0 0.0
        %1789 = vmatprep.subr.mxu0 0.0
        %1790 = vmatpush1.xpose.msra.mxu0 0.0
        %1791 = vmatprep.subr.mxu0 0.0
        %1792 = vmatpush1.xpose.msra.mxu0 0.0
        %1793 = vmatprep.subr.mxu0 0.0
        %1794 = vmatpush1.xpose.msra.mxu0 0.0
        %1795 = vmatprep.subr.mxu0 0.0
        %1796 = vmatpush1.xpose.msra.mxu0 0.0
        %1797 = vmatprep.subr.mxu0 0.0
        %1798 = vmatpush1.xpose.msra.mxu0 0.0
        %1799 = vmatprep.subr.mxu0 0.0
        %1800 = vmatpush1.xpose.msra.mxu0 0.0
        %1801 = vmatprep.subr.mxu0 0.0
        %1802 = vmatpush1.xpose.msra.mxu0 0.0
        %1803 = vmatprep.subr.mxu0 0.0
        %1804 = vmatpush1.xpose.msra.mxu0 0.0
        %1805 = vmatprep.subr.mxu0 0.0
        %1806 = vmatpush1.xpose.msra.mxu0 0.0
        %1807 = vmatprep.subr.mxu0 0.0
        %1808 = vmatpush1.xpose.msra.mxu0 0.0
        %1809 = vmatprep.subr.mxu0 0.0
        %1810 = vmatpush1.xpose.msra.mxu0 0.0
        %1811 = vmatprep.mubr.f32.mxu0 0.0
        %1812 = vmatmul.mubr.f32.gmra.mrb[0].mxu0 %v1742
        %v1813 = vpop.f32.mrb[0].mxu0
        %v1814 = vadd.f32 0.0, %v1813
        %v1815 = vpop.f32.mrb[0].mxu0
        %1816 = vdwg.mxu0
        %1817 = vxpose.xlu0.b32.start [1/16] %v1586, 128
        %1818 = vxpose.xlu0.b32.cont [2/16] 0.0, 128
        %1819 = vxpose.xlu0.b32.cont [3/16] 0.0, 128
        %1820 = vxpose.xlu0.b32.cont [4/16] 0.0, 128
        %1821 = vxpose.xlu0.b32.cont [5/16] 0.0, 128
        %1822 = vxpose.xlu0.b32.cont [6/16] 0.0, 128
        %1823 = vxpose.xlu0.b32.cont [7/16] 0.0, 128
        %1824 = vxpose.xlu0.b32.cont [8/16] 0.0, 128
        %1825 = vxpose.xlu0.b32.cont [9/16] 0.0, 128
        %1826 = vxpose.xlu0.b32.cont [10/16] 0.0, 128
        %1827 = vxpose.xlu0.b32.cont [11/16] 0.0, 128
        %1828 = vxpose.xlu0.b32.cont [12/16] 0.0, 128
        %1829 = vxpose.xlu0.b32.cont [13/16] 0.0, 128
        %1830 = vxpose.xlu0.b32.cont [14/16] 0.0, 128
        %1831 = vxpose.xlu0.b32.cont [15/16] 0.0, 128
        %1832 = vxpose.xlu0.b32.end [16/16] 0.0, 128
        %v1833 = vpop.trf.xlu0
        %v1834 = vpop.trf.xlu0
        %v1835 = vpop.trf.xlu0
        %v1836 = vpop.trf.xlu0
        %v1837 = vpop.trf.xlu0
        %v1838 = vpop.trf.xlu0
        %v1839 = vpop.trf.xlu0
        %v1840 = vpop.trf.xlu0
        %v1841 = vpop.trf.xlu0
        %v1842 = vpop.trf.xlu0
        %v1843 = vpop.trf.xlu0
        %v1844 = vpop.trf.xlu0
        %v1845 = vpop.trf.xlu0
        %v1846 = vpop.trf.xlu0
        %v1847 = vpop.trf.xlu0
        %v1848 = vpop.trf.xlu0
        %1849 = vxpose.xlu0.b32.start [1/16] %v1662, 128
        %1850 = vxpose.xlu0.b32.cont [2/16] 0.0, 128
        %1851 = vxpose.xlu0.b32.cont [3/16] 0.0, 128
        %1852 = vxpose.xlu0.b32.cont [4/16] 0.0, 128
        %1853 = vxpose.xlu0.b32.cont [5/16] 0.0, 128
        %1854 = vxpose.xlu0.b32.cont [6/16] 0.0, 128
        %1855 = vxpose.xlu0.b32.cont [7/16] 0.0, 128
        %1856 = vxpose.xlu0.b32.cont [8/16] 0.0, 128
        %1857 = vxpose.xlu0.b32.cont [9/16] 0.0, 128
        %1858 = vxpose.xlu0.b32.cont [10/16] 0.0, 128
        %1859 = vxpose.xlu0.b32.cont [11/16] 0.0, 128
        %1860 = vxpose.xlu0.b32.cont [12/16] 0.0, 128
        %1861 = vxpose.xlu0.b32.cont [13/16] 0.0, 128
        %1862 = vxpose.xlu0.b32.cont [14/16] 0.0, 128
        %1863 = vxpose.xlu0.b32.cont [15/16] 0.0, 128
        %1864 = vxpose.xlu0.b32.end [16/16] 0.0, 128
        %v1865 = vpop.trf.xlu0
        %v1866 = vpop.trf.xlu0
        %v1867 = vpop.trf.xlu0
        %v1868 = vpop.trf.xlu0
        %v1869 = vpop.trf.xlu0
        %v1870 = vpop.trf.xlu0
        %v1871 = vpop.trf.xlu0
        %v1872 = vpop.trf.xlu0
        %v1873 = vpop.trf.xlu0
        %v1874 = vpop.trf.xlu0
        %v1875 = vpop.trf.xlu0
        %v1876 = vpop.trf.xlu0
        %v1877 = vpop.trf.xlu0
        %v1878 = vpop.trf.xlu0
        %v1879 = vpop.trf.xlu0
        %v1880 = vpop.trf.xlu0
        %1881 = vxpose.xlu0.b32.start [1/16] %v1738, 128
        %1882 = vxpose.xlu0.b32.cont [2/16] 0.0, 128
        %1883 = vxpose.xlu0.b32.cont [3/16] 0.0, 128
        %1884 = vxpose.xlu0.b32.cont [4/16] 0.0, 128
        %1885 = vxpose.xlu0.b32.cont [5/16] 0.0, 128
        %1886 = vxpose.xlu0.b32.cont [6/16] 0.0, 128
        %1887 = vxpose.xlu0.b32.cont [7/16] 0.0, 128
        %1888 = vxpose.xlu0.b32.cont [8/16] 0.0, 128
        %1889 = vxpose.xlu0.b32.cont [9/16] 0.0, 128
        %1890 = vxpose.xlu0.b32.cont [10/16] 0.0, 128
        %1891 = vxpose.xlu0.b32.cont [11/16] 0.0, 128
        %1892 = vxpose.xlu0.b32.cont [12/16] 0.0, 128
        %1893 = vxpose.xlu0.b32.cont [13/16] 0.0, 128
        %1894 = vxpose.xlu0.b32.cont [14/16] 0.0, 128
        %1895 = vxpose.xlu0.b32.cont [15/16] 0.0, 128
        %1896 = vxpose.xlu0.b32.end [16/16] 0.0, 128
        %v1897 = vpop.trf.xlu0
        %v1898 = vpop.trf.xlu0
        %v1899 = vpop.trf.xlu0
        %v1900 = vpop.trf.xlu0
        %v1901 = vpop.trf.xlu0
        %v1902 = vpop.trf.xlu0
        %v1903 = vpop.trf.xlu0
        %v1904 = vpop.trf.xlu0
        %v1905 = vpop.trf.xlu0
        %v1906 = vpop.trf.xlu0
        %v1907 = vpop.trf.xlu0
        %v1908 = vpop.trf.xlu0
        %v1909 = vpop.trf.xlu0
        %v1910 = vpop.trf.xlu0
        %v1911 = vpop.trf.xlu0
        %v1912 = vpop.trf.xlu0
        %1913 = vxpose.xlu0.b32.start [1/16] %v1814, 128
        %1914 = vxpose.xlu0.b32.cont [2/16] 0.0, 128
        %1915 = vxpose.xlu0.b32.cont [3/16] 0.0, 128
        %1916 = vxpose.xlu0.b32.cont [4/16] 0.0, 128
        %1917 = vxpose.xlu0.b32.cont [5/16] 0.0, 128
        %1918 = vxpose.xlu0.b32.cont [6/16] 0.0, 128
        %1919 = vxpose.xlu0.b32.cont [7/16] 0.0, 128
        %1920 = vxpose.xlu0.b32.cont [8/16] 0.0, 128
        %1921 = vxpose.xlu0.b32.cont [9/16] 0.0, 128
        %1922 = vxpose.xlu0.b32.cont [10/16] 0.0, 128
        %1923 = vxpose.xlu0.b32.cont [11/16] 0.0, 128
        %1924 = vxpose.xlu0.b32.cont [12/16] 0.0, 128
        %1925 = vxpose.xlu0.b32.cont [13/16] 0.0, 128
        %1926 = vxpose.xlu0.b32.cont [14/16] 0.0, 128
        %1927 = vxpose.xlu0.b32.cont [15/16] 0.0, 128
        %1928 = vxpose.xlu0.b32.end [16/16] 0.0, 128
        %v1929 = vpop.trf.xlu0
        %v1930 = vpop.trf.xlu0
        %v1931 = vpop.trf.xlu0
        %v1932 = vpop.trf.xlu0
        %v1933 = vpop.trf.xlu0
        %v1934 = vpop.trf.xlu0
        %v1935 = vpop.trf.xlu0
        %v1936 = vpop.trf.xlu0
        %v1937 = vpop.trf.xlu0
        %v1938 = vpop.trf.xlu0
        %v1939 = vpop.trf.xlu0
        %v1940 = vpop.trf.xlu0
        %v1941 = vpop.trf.xlu0
        %v1942 = vpop.trf.xlu0
        %v1943 = vpop.trf.xlu0
        %v1944 = vpop.trf.xlu0
        %1945 = vxpose.xlu0.b32.start [1/16] %v1833, 128
        %1946 = vxpose.xlu0.b32.cont [2/16] %v1865, 128
        %1947 = vxpose.xlu0.b32.cont [3/16] %v1897, 128
        %1948 = vxpose.xlu0.b32.cont [4/16] %v1929, 128
        %1949 = vxpose.xlu0.b32.cont [5/16] 0.0, 128
        %1950 = vxpose.xlu0.b32.cont [6/16] 0.0, 128
        %1951 = vxpose.xlu0.b32.cont [7/16] 0.0, 128
        %1952 = vxpose.xlu0.b32.cont [8/16] 0.0, 128
        %1953 = vxpose.xlu0.b32.cont [9/16] 0.0, 128
        %1954 = vxpose.xlu0.b32.cont [10/16] 0.0, 128
        %1955 = vxpose.xlu0.b32.cont [11/16] 0.0, 128
        %1956 = vxpose.xlu0.b32.cont [12/16] 0.0, 128
        %1957 = vxpose.xlu0.b32.cont [13/16] 0.0, 128
        %1958 = vxpose.xlu0.b32.cont [14/16] 0.0, 128
        %1959 = vxpose.xlu0.b32.cont [15/16] 0.0, 128
        %1960 = vxpose.xlu0.b32.end [16/16] 0.0, 128
        %v1961 = vpop.trf.xlu0
        %v1962 = vpop.trf.xlu0
        %v1963 = vpop.trf.xlu0
        %v1964 = vpop.trf.xlu0
        %v1965 = vpop.trf.xlu0
        %v1966 = vpop.trf.xlu0
        %v1967 = vpop.trf.xlu0
        %v1968 = vpop.trf.xlu0
        %v1969 = vpop.trf.xlu0
        %v1970 = vpop.trf.xlu0
        %v1971 = vpop.trf.xlu0
        %v1972 = vpop.trf.xlu0
        %v1973 = vpop.trf.xlu0
        %v1974 = vpop.trf.xlu0
        %v1975 = vpop.trf.xlu0
        %v1976 = vpop.trf.xlu0
        %v1977 = vadd.f32 %v860, %v1961
        %v1978 = vld [vmem:[%s10] sm:$0x1]
        %v1979 = vld [vmem:[%s11] sm:$0x1]
        %v1980 = vsel %vm832, %v1977, 0.0
        %1981 = vadd.xlane.f32.xlu0 %v1980
        %v1982 = vpop.xlane.xlu0 %1981
        %v1983 = vmul.f32 %v1982, %v836
        %v1984 = vsub.f32 %v1977, %v1983
        %v1985 = vmul.f32 %v1984, %v1984
        %v1986 = vsel %vm832, %v1985, 0.0
        %1987 = vadd.xlane.f32.xlu0 %v1986
        %v1988 = vpop.xlane.xlu0 %1987
        %v1989 = vmul.f32 %v1988, %v836
        %v1990 = vadd.f32 %v1989, 1e-05
        %v1991 = vrsqrt.pop %v1990
        %v1992 = vmul.f32 %v1984, %v1991
        %v1994 = vlaneseq
        %v1995 = vshrl.u32 %v1994, 7
        %v1996 = vsub.s32 0, %v1995
        %v1997 = vrot.slane %v1978, %v1996
        %v1999 = vmul.f32 %v1992, %v1997
        %v2001 = vlaneseq
        %v2002 = vshrl.u32 %v2001, 7
        %v2003 = vsub.s32 0, %v2002
        %v2004 = vrot.slane %v1979, %v2003
        %v2006 = vadd.f32 %v1999, %v2004
        %v2007 = vld [vmem:[%s12] sm:$0xff]
        %v2008 = vld [vmem:[%s12 + $0x8] sm:$0xff]
        %v2009 = vld [vmem:[%s12 + $0x10] sm:$0xff]
        %v2010 = vld [vmem:[%s12 + $0x18] sm:$0xff]
        %v2011 = vld [vmem:[%s13] sm:$0x1]
        %v2013 = vlaneseq
        %v2014 = vshrl.u32 %v2013, 7
        %v2015 = vsub.s32 0, %v2014
        %v2016 = vrot.slane %v2011, %v2015
        %v2019 = vsel %vm832, %v2006, 0
        %2021 = vmatprep.subr.mxu0 0.0
        %2022 = vmatpush1.msra.mxu0 %v2007
        %2023 = vmatprep.subr.mxu0 0.0
        %2024 = vmatpush1.msra.mxu0 %v2008
        %2025 = vmatprep.subr.mxu0 0.0
        %2026 = vmatpush1.msra.mxu0 %v2009
        %2027 = vmatprep.subr.mxu0 0.0
        %2028 = vmatpush1.msra.mxu0 %v2010
        %2029 = vmatprep.subr.mxu0 0.0
        %2030 = vmatpush1.msra.mxu0 0.0
        %2031 = vmatprep.subr.mxu0 0.0
        %2032 = vmatpush1.msra.mxu0 0.0
        %2033 = vmatprep.subr.mxu0 0.0
        %2034 = vmatpush1.msra.mxu0 0.0
        %2035 = vmatprep.subr.mxu0 0.0
        %2036 = vmatpush1.msra.mxu0 0.0
        %2037 = vmatprep.subr.mxu0 0.0
        %2038 = vmatpush1.msra.mxu0 0.0
        %2039 = vmatprep.subr.mxu0 0.0
        %2040 = vmatpush1.msra.mxu0 0.0
        %2041 = vmatprep.subr.mxu0 0.0
        %2042 = vmatpush1.msra.mxu0 0.0
        %2043 = vmatprep.subr.mxu0 0.0
        %2044 = vmatpush1.msra.mxu0 0.0
        %2045 = vmatprep.subr.mxu0 0.0
        %2046 = vmatpush1.msra.mxu0 0.0
        %2047 = vmatprep.subr.mxu0 0.0
        %2048 = vmatpush1.msra.mxu0 0.0
        %2049 = vmatprep.subr.mxu0 0.0
        %2050 = vmatpush1.msra.mxu0 0.0
        %2051 = vmatprep.subr.mxu0 0.0
        %2052 = vmatpush1.msra.mxu0 0.0
        %2053 = vmatprep.subr.mxu0 0.0
        %2054 = vmatpush1.msra.mxu0 0.0
        %2055 = vmatprep.subr.mxu0 0.0
        %2056 = vmatpush1.msra.mxu0 0.0
        %2057 = vmatprep.subr.mxu0 0.0
        %2058 = vmatpush1.msra.mxu0 0.0
        %2059 = vmatprep.subr.mxu0 0.0
        %2060 = vmatpush1.msra.mxu0 0.0
        %2061 = vmatprep.subr.mxu0 0.0
        %2062 = vmatpush1.msra.mxu0 0.0
        %2063 = vmatprep.subr.mxu0 0.0
        %2064 = vmatpush1.msra.mxu0 0.0
        %2065 = vmatprep.subr.mxu0 0.0
        %2066 = vmatpush1.msra.mxu0 0.0
        %2067 = vmatprep.subr.mxu0 0.0
        %2068 = vmatpush1.msra.mxu0 0.0
        %2069 = vmatprep.subr.mxu0 0.0
        %2070 = vmatpush1.msra.mxu0 0.0
        %2071 = vmatprep.subr.mxu0 0.0
        %2072 = vmatpush1.msra.mxu0 0.0
        %2073 = vmatprep.subr.mxu0 0.0
        %2074 = vmatpush1.msra.mxu0 0.0
        %2075 = vmatprep.subr.mxu0 0.0
        %2076 = vmatpush1.msra.mxu0 0.0
        %2077 = vmatprep.subr.mxu0 0.0
        %2078 = vmatpush1.msra.mxu0 0.0
        %2079 = vmatprep.subr.mxu0 0.0
        %2080 = vmatpush1.msra.mxu0 0.0
        %2081 = vmatprep.subr.mxu0 0.0
        %2082 = vmatpush1.msra.mxu0 0.0
        %2083 = vmatprep.subr.mxu0 0.0
        %2084 = vmatpush1.msra.mxu0 0.0
        %2085 = vmatprep.mubr.f32.mxu0 0.0
        %2086 = vmatmul.mubr.f32.gmra.mrb[0].mxu0 %v2019
        %v2087 = vpop.f32.mrb[0].mxu0
        %v2088 = vadd.f32 %v2016, %v2087
        %v2089 = vpop.f32.mrb[0].mxu0
        %2090 = vdwg.mxu0
        %v2091 = vmax.f32 %v2088, 0.0
        %v2092 = vld [vmem:[%s14] sm:$0xff]
        %v2093 = vld [vmem:[%s14 + $0x8] sm:$0xff]
        %v2094 = vld [vmem:[%s14 + $0x10] sm:$0xff]
        %v2095 = vld [vmem:[%s14 + $0x18] sm:$0xff]
        %v2096 = vld [vmem:[%s15] sm:$0x1]
        %v2098 = vlaneseq
        %v2099 = vshrl.u32 %v2098, 7
        %v2100 = vsub.s32 0, %v2099
        %v2101 = vrot.slane %v2096, %v2100
        %v2104 = vsel %vm832, %v2091, 0
        %2106 = vmatprep.subr.mxu0 0.0
        %2107 = vmatpush1.msra.mxu0 %v2092
        %2108 = vmatprep.subr.mxu0 0.0
        %2109 = vmatpush1.msra.mxu0 %v2093
        %2110 = vmatprep.subr.mxu0 0.0
        %2111 = vmatpush1.msra.mxu0 %v2094
        %2112 = vmatprep.subr.mxu0 0.0
        %2113 = vmatpush1.msra.mxu0 %v2095
        %2114 = vmatprep.subr.mxu0 0.0
        %2115 = vmatpush1.msra.mxu0 0.0
        %2116 = vmatprep.subr.mxu0 0.0
        %2117 = vmatpush1.msra.mxu0 0.0
        %2118 = vmatprep.subr.mxu0 0.0
        %2119 = vmatpush1.msra.mxu0 0.0
        %2120 = vmatprep.subr.mxu0 0.0
        %2121 = vmatpush1.msra.mxu0 0.0
        %2122 = vmatprep.subr.mxu0 0.0
        %2123 = vmatpush1.msra.mxu0 0.0
        %2124 = vmatprep.subr.mxu0 0.0
        %2125 = vmatpush1.msra.mxu0 0.0
        %2126 = vmatprep.subr.mxu0 0.0
        %2127 = vmatpush1.msra.mxu0 0.0
        %2128 = vmatprep.subr.mxu0 0.0
        %2129 = vmatpush1.msra.mxu0 0.0
        %2130 = vmatprep.subr.mxu0 0.0
        %2131 = vmatpush1.msra.mxu0 0.0
        %2132 = vmatprep.subr.mxu0 0.0
        %2133 = vmatpush1.msra.mxu0 0.0
        %2134 = vmatprep.subr.mxu0 0.0
        %2135 = vmatpush1.msra.mxu0 0.0
        %2136 = vmatprep.subr.mxu0 0.0
        %2137 = vmatpush1.msra.mxu0 0.0
        %2138 = vmatprep.subr.mxu0 0.0
        %2139 = vmatpush1.msra.mxu0 0.0
        %2140 = vmatprep.subr.mxu0 0.0
        %2141 = vmatpush1.msra.mxu0 0.0
        %2142 = vmatprep.subr.mxu0 0.0
        %2143 = vmatpush1.msra.mxu0 0.0
        %2144 = vmatprep.subr.mxu0 0.0
        %2145 = vmatpush1.msra.mxu0 0.0
        %2146 = vmatprep.subr.mxu0 0.0
        %2147 = vmatpush1.msra.mxu0 0.0
        %2148 = vmatprep.subr.mxu0 0.0
        %2149 = vmatpush1.msra.mxu0 0.0
        %2150 = vmatprep.subr.mxu0 0.0
        %2151 = vmatpush1.msra.mxu0 0.0
        %2152 = vmatprep.subr.mxu0 0.0
        %2153 = vmatpush1.msra.mxu0 0.0
        %2154 = vmatprep.subr.mxu0 0.0
        %2155 = vmatpush1.msra.mxu0 0.0
        %2156 = vmatprep.subr.mxu0 0.0
        %2157 = vmatpush1.msra.mxu0 0.0
        %2158 = vmatprep.subr.mxu0 0.0
        %2159 = vmatpush1.msra.mxu0 0.0
        %2160 = vmatprep.subr.mxu0 0.0
        %2161 = vmatpush1.msra.mxu0 0.0
        %2162 = vmatprep.subr.mxu0 0.0
        %2163 = vmatpush1.msra.mxu0 0.0
        %2164 = vmatprep.subr.mxu0 0.0
        %2165 = vmatpush1.msra.mxu0 0.0
        %2166 = vmatprep.subr.mxu0 0.0
        %2167 = vmatpush1.msra.mxu0 0.0
        %2168 = vmatprep.subr.mxu0 0.0
        %2169 = vmatpush1.msra.mxu0 0.0
        %2170 = vmatprep.mubr.f32.mxu0 0.0
        %2171 = vmatmul.mubr.f32.gmra.mrb[0].mxu0 %v2104
        %v2172 = vpop.f32.mrb[0].mxu0
        %v2173 = vadd.f32 %v2101, %v2172
        %v2174 = vpop.f32.mrb[0].mxu0
        %2175 = vdwg.mxu0
        %v2176 = vadd.f32 %v2006, %v2173
        %v2177 = vld [vmem:[%s16] sm:$0xff]
        %v2178 = vld [vmem:[%s16 + $0x8] sm:$0xff]
        %v2179 = vld [vmem:[%s16 + $0x10] sm:$0xff]
        %v2180 = vld [vmem:[%s16 + $0x18] sm:$0xff]
        %v2182 = vsel %vm832, %v2176, 0
        %2184 = vmatprep.subr.mxu0 0.0
        %2185 = vmatpush1.msra.mxu0 %v2177
        %2186 = vmatprep.subr.mxu0 0.0
        %2187 = vmatpush1.msra.mxu0 %v2178
        %2188 = vmatprep.subr.mxu0 0.0
        %2189 = vmatpush1.msra.mxu0 %v2179
        %2190 = vmatprep.subr.mxu0 0.0
        %2191 = vmatpush1.msra.mxu0 %v2180
        %2192 = vmatprep.subr.mxu0 0.0
        %2193 = vmatpush1.msra.mxu0 0.0
        %2194 = vmatprep.subr.mxu0 0.0
        %2195 = vmatpush1.msra.mxu0 0.0
        %2196 = vmatprep.subr.mxu0 0.0
        %2197 = vmatpush1.msra.mxu0 0.0
        %2198 = vmatprep.subr.mxu0 0.0
        %2199 = vmatpush1.msra.mxu0 0.0
        %2200 = vmatprep.subr.mxu0 0.0
        %2201 = vmatpush1.msra.mxu0 0.0
        %2202 = vmatprep.subr.mxu0 0.0
        %2203 = vmatpush1.msra.mxu0 0.0
        %2204 = vmatprep.subr.mxu0 0.0
        %2205 = vmatpush1.msra.mxu0 0.0
        %2206 = vmatprep.subr.mxu0 0.0
        %2207 = vmatpush1.msra.mxu0 0.0
        %2208 = vmatprep.subr.mxu0 0.0
        %2209 = vmatpush1.msra.mxu0 0.0
        %2210 = vmatprep.subr.mxu0 0.0
        %2211 = vmatpush1.msra.mxu0 0.0
        %2212 = vmatprep.subr.mxu0 0.0
        %2213 = vmatpush1.msra.mxu0 0.0
        %2214 = vmatprep.subr.mxu0 0.0
        %2215 = vmatpush1.msra.mxu0 0.0
        %2216 = vmatprep.subr.mxu0 0.0
        %2217 = vmatpush1.msra.mxu0 0.0
        %2218 = vmatprep.subr.mxu0 0.0
        %2219 = vmatpush1.msra.mxu0 0.0
        %2220 = vmatprep.subr.mxu0 0.0
        %2221 = vmatpush1.msra.mxu0 0.0
        %2222 = vmatprep.subr.mxu0 0.0
        %2223 = vmatpush1.msra.mxu0 0.0
        %2224 = vmatprep.subr.mxu0 0.0
        %2225 = vmatpush1.msra.mxu0 0.0
        %2226 = vmatprep.subr.mxu0 0.0
        %2227 = vmatpush1.msra.mxu0 0.0
        %2228 = vmatprep.subr.mxu0 0.0
        %2229 = vmatpush1.msra.mxu0 0.0
        %2230 = vmatprep.subr.mxu0 0.0
        %2231 = vmatpush1.msra.mxu0 0.0
        %2232 = vmatprep.subr.mxu0 0.0
        %2233 = vmatpush1.msra.mxu0 0.0
        %2234 = vmatprep.subr.mxu0 0.0
        %2235 = vmatpush1.msra.mxu0 0.0
        %2236 = vmatprep.subr.mxu0 0.0
        %2237 = vmatpush1.msra.mxu0 0.0
        %2238 = vmatprep.subr.mxu0 0.0
        %2239 = vmatpush1.msra.mxu0 0.0
        %2240 = vmatprep.subr.mxu0 0.0
        %2241 = vmatpush1.msra.mxu0 0.0
        %2242 = vmatprep.subr.mxu0 0.0
        %2243 = vmatpush1.msra.mxu0 0.0
        %2244 = vmatprep.subr.mxu0 0.0
        %2245 = vmatpush1.msra.mxu0 0.0
        %2246 = vmatprep.subr.mxu0 0.0
        %2247 = vmatpush1.msra.mxu0 0.0
        %2248 = vmatprep.mubr.f32.mxu0 0.0
        %2249 = vmatmul.mubr.f32.gmra.mrb[0].mxu0 %v2182
        %v2250 = vpop.f32.mrb[0].mxu0
        %v2251 = vadd.f32 0.0, %v2250
        %v2252 = vpop.f32.mrb[0].mxu0
        %2253 = vdwg.mxu0
        %v2254 = vlaneseq
        %v2255 = vshrl.u32 %v2254, 7
        %v2256 = vsub.s32 7, %v2255
        %v2257 = vrot.slane %v2251, %v2256
        %v2258 = vmul.f32 %v2251, %v2257
        %v2259 = vsel %vm832, %v2258, 0.0
        %2260 = vadd.xlane.f32.xlu0 %v2259
        %v2261 = vpop.xlane.xlu0 %2260
        %v2262 = vrot.slane %v2261, 4
        %v2263 = vmax.f32 %v2261, %v2262
        %v2264 = vrot.slane %v2263, 2
        %v2265 = vmax.f32 %v2263, %v2264
        %v2266 = vrot.slane %v2265, 1
        %v2267 = vmax.f32 %v2265, %v2266
        %v2268 = vsub.f32 %v2261, %v2267
        %v2269 = vmul.f32 %v2268, 1.442695
        %v2270 = vpow.pop %v2269
        %v2271 = vrot.slane %v2270, 4
        %v2272 = vadd.f32 %v2270, %v2271
        %v2273 = vrot.slane %v2272, 2
        %v2274 = vadd.f32 %v2272, %v2273
        %v2275 = vrot.slane %v2274, 1
        %v2276 = vadd.f32 %v2274, %v2275
        %v2277 = vrcp.pop %v2276
        %v2278 = vmul.f32 %v2276, %v2277
        %v2279 = vsub.f32 2.0, %v2278
        %v2280 = vmul.f32 %v2277, %v2279
        %v2281 = vmul.f32 %v2270, %v2280
        %v2282 = vmul.f32 %v2281, %v2176
        %v2283 = vsel %vm832, %v2282, 0.0
        %v2284 = vrot.slane %v2283, 4
        %v2285 = vadd.f32 %v2283, %v2284
        %v2286 = vrot.slane %v2285, 2
        %v2287 = vadd.f32 %v2285, %v2286
        %v2288 = vrot.slane %v2287, 1
        %v2289 = vadd.f32 %v2287, %v2288
        %v2290 = vld [vmem:[%s17] sm:$0x1]
        %v2291 = vmul.f32 %v2289, %v2290
        %vm2292 = vcmask 253952
        %v2293 = vsel %vm2292, %v2291, 0.0
        %2294 = vadd.xlane.f32.xlu0 %v2293
        %v2295 = vpop.xlane.xlu0 %2294
        %v2296 = vld [vmem:[#allocation2] sm:$0x1]
        %v2297 = vadd.f32 %v2295, %v2296
        %vm2298 = vcmask 0
        %2299 = vst.msk [vmem:[%s644] sm:$0x1] %vm2298, %v2297
        %p2300 = scmp.lt.s32.totalorder %s36, 3
        %s2301 = scalar_select %p2300, %s36, 3
        %s2302 = scalar_lea.vmem %s19, %s2301
        // Predicated region
        $region105: #{tpu_custom_call.1} parent=95 // pred_check
          %p2303 = pneg %p463
        $region106: #{tpu_custom_call.1} parent=95 // pred_check_branch
          %2305 = sbr.rel (%p2303) target = $region108
        $region107: #{tpu_custom_call.1} parent=95 // pred_region
          _
        $region108: #{tpu_custom_call.1} parent=95 // pred_fallthru
          _
      $region96: #{tpu_custom_call.1} parent=5 // pred_fallthru
        _
      %p2306 = scmp.le.s32.totalorder 2, %s31
      // Predicated region
      $region109: #{tpu_custom_call.1} parent=5 // pred_check
        %p2307 = pneg %p2306
      $region110: #{tpu_custom_call.1} parent=5 // pred_check_branch
        %2309 = sbr.rel (%p2307) target = $region112
      $region111: #{tpu_custom_call.1} parent=5 // pred_region
        %s2310 = ssub.s32 %s31, 2
        // Predicated region
        $region113: #{tpu_custom_call.1} parent=111 // pred_check
          %p2311 = pneg %p469
        $region114: #{tpu_custom_call.1} parent=111 // pred_check_branch
          %2313 = sbr.rel (%p2311) target = $region116
        $region115: #{tpu_custom_call.1} parent=111 // pred_region
          %p2314 = scmp.lt.s32.totalorder %s37, 3
          %s2315 = scalar_select %p2314, %s37, 3
          %s2316 = scalar_lea.vmem %s19, %s2315
        $region116: #{tpu_custom_call.1} parent=111 // pred_fallthru
          _
      $region112: #{tpu_custom_call.1} parent=5 // pred_fallthru
        _
    $region6: #{tpu_custom_call.1} parent=1 // loop_footer
      %s35 = sadd.s32 1, %s31
    $region7: #{tpu_custom_call.1} parent=1 // loop_footer_branch
      %30 = sbr.rel target = $region3
    $region8: #{tpu_custom_call.1} parent=1 // loop_exit
      _
    %2317 = vsyncpa [#allocation4], 1
    %s2318 = scalar_lea.sflag [#allocation4], 1
    %2319 = vsyncpa %s2318, 1
    %2320 = vsyncpa [#allocation6], 1

</llo_original>
